<compile_context>
chip_gen: v5e
topology: v5e:2x2
jax: 0.10.0
libtpu: 0.0.40
codegen_flags: <defaults>
</compile_context>

<pallas_src>
import functools
import math

import jax
import jax.numpy as jnp
from jax.experimental import pallas as pl
from jax.experimental.pallas import tpu as pltpu


# ----------------------------- in-kernel helpers -----------------------------
def _mm(a, b):
    """MXU matmul with f32 accumulation; casts the activation operand to the weight dtype
    (weights are bf16, so the MXU sees bf16 x bf16 -> f32)."""
    return jnp.dot(a.astype(b.dtype), b, preferred_element_type=jnp.float32)


def _gru_cell(x, h, wih_t, whh_t, bih, bhh):
    """PyTorch GRU cell with packed gates [r | z | n] along the 3H columns."""
    H = h.shape[-1]
    gi = _mm(x, wih_t) + bih      # (B, 3H)
    gh = _mm(h, whh_t) + bhh      # (B, 3H)
    r = jax.nn.sigmoid(gi[:, 0:H] + gh[:, 0:H])
    z = jax.nn.sigmoid(gi[:, H:2 * H] + gh[:, H:2 * H])
    n = jnp.tanh(gi[:, 2 * H:3 * H] + r * gh[:, 2 * H:3 * H])
    return (1.0 - z) * n + z * h


# ----------------------------- fused kernel -----------------------------
def fused_seq2seq_kernel(
        # inputs (whole arrays resident in VMEM for the single invocation)
        emb_enc_ref, mask_ref, emb_dec_ref,
        enc_wih_t_ref, enc_whh_t_ref, enc_bih_ref, enc_bhh_ref,
        wenc_t_ref, wdec_t_ref, va_row_ref,
        comb_we_t_ref, comb_wc_t_ref, comb_b_ref,
        dec_wih_t_ref, dec_whh_t_ref, dec_bih_ref, dec_bhh_ref,
        # outputs (one bulk HBM writeback each at kernel end)
        tokens_ref, attn_ref,
        *, sos_token):
    f32 = jnp.float32
    S, _E = emb_enc_ref.shape
    H = wdec_t_ref.shape[0]
    Vd = emb_dec_ref.shape[0]
    max_len = tokens_ref.shape[0]

    # ---- hoisted, loop-invariant loads / constants (JAX does not CSE these in-loop) ----
    mask_row = mask_ref[...]               # (1, S) int32
    emb_dec = emb_dec_ref[...]             # (Vd, H) f32
    wdec_t = wdec_t_ref[...]               # (H, H) bf16
    va_row = va_row_ref[...]               # (1, H) bf16
    comb_we = comb_we_t_ref[...]           # (H, E) bf16
    comb_wc = comb_wc_t_ref[...]           # (H, E) bf16
    comb_b = comb_b_ref[...]               # (1, E) f32
    dec_wih = dec_wih_t_ref[...]           # (E, 3H) bf16
    dec_whh = dec_whh_t_ref[...]           # (H, 3H) bf16
    dec_bih = dec_bih_ref[...]             # (1, 3H) f32
    dec_bhh = dec_bhh_ref[...]             # (1, 3H) f32
    vocab_iota = jax.lax.broadcasted_iota(jnp.int32, (1, Vd), 1)
    hid_iota = jax.lax.broadcasted_iota(jnp.int32, (1, H), 1)

    # ---- encoder: nn.GRU sees (seq_len=1, batch=S, E) -> one GRU step with h0 = 0 ----
    enc_h = _gru_cell(emb_enc_ref[...], jnp.zeros((S, H), f32),
                      enc_wih_t_ref[...], enc_whh_t_ref[...],
                      enc_bih_ref[...], enc_bhh_ref[...])            # (S, H); output == hidden
    enc_proj = _mm(enc_h, wenc_t_ref[...])                           # Wenc(enc): step-invariant

    h0 = enc_h[S - 1:S, :]                 # decoder_hidden = encoder_hidden[-1][-1]
    tok0 = jnp.full((1, 1), sos_token, jnp.int32)

    def step(i, carry):
        h, tok = carry                                               # (1,H) f32, (1,1) i32

        # decoder embedding lookup as a one-hot matmul (data-dependent token id).
        # NOTE: at realistic vocab sizes switch to an SMEM token + dynamic-row gather.
        onehot = (vocab_iota == tok).astype(f32)                     # (1, Vd)
        embedded = _mm(onehot, emb_dec)                              # (1, H)

        # ---- Bahdanau additive attention; energies lane-dense as (1, S) via A @ B^T ----
        temp_dec = _mm(h, wdec_t)                                    # (1, H)
        x = jnp.tanh(temp_dec + enc_proj)                            # (S, H)
        e = jax.lax.dot_general(va_row, x.astype(va_row.dtype),
                                dimension_numbers=(((1,), (1,)), ((), ())),
                                preferred_element_type=f32)          # (1, S)
        e = jnp.where(mask_row != 0, e, -jnp.inf)                    # masked_fill_
        m = jnp.max(e, axis=-1, keepdims=True)
        p = jnp.exp(e - m)
        w_row = p / jnp.sum(p, axis=-1, keepdims=True)               # softmax over S (lanes)
        ctx = jnp.dot(w_row, enc_h, preferred_element_type=f32)      # (1, H) on the MXU

        # ---- attention_combiner(cat(embedded, context)) as a split matmul, then relu ----
        xc = jnp.maximum(_mm(embedded, comb_we) + _mm(ctx, comb_wc) + comb_b, 0.0)

        # ---- decoder GRU cell: output == new hidden ----
        h_new = _gru_cell(xc, h, dec_wih, dec_whh, dec_bih, dec_bhh)  # (1, H)

        # ---- token id: topk(1) over the GRU *output* (hidden dim), faithful to PyTorch ----
        mx = jnp.max(h_new, axis=-1, keepdims=True)
        tok_new = jnp.min(jnp.where(h_new == mx, hid_iota, H),
                          axis=-1, keepdims=True)                    # (1, 1) int32, first max

        tokens_ref[pl.ds(i, 1), :] = tok_new
        attn_ref[pl.ds(i, 1), :] = w_row
        return (h_new, tok_new)

    # All max_length steps run on-device; the host truncates at the first EOS with a single
    # device->host read (PyTorch's early `break`).  For large max_length, gate the body on
    # an SMEM 'done' flag instead.
    jax.lax.fori_loop(0, max_len, step, (h0, tok0), unroll=True)


# ----------------------------- wrapper -----------------------------
def _full_spec(shape):
    zeros = (0,) * len(shape)
    return pl.BlockSpec(shape, lambda i, zeros=zeros: zeros)   # whole array, DMA'd once


@functools.partial(jax.jit, static_argnames=("max_length", "sos_token"))
def run_seq2seq(params, emb_enc, mask_row, *, max_length, sos_token):
    S, _E = emb_enc.shape

    operands = (
        emb_enc, mask_row, params["emb_dec"],
        params["enc_wih_t"], params["enc_whh_t"], params["enc_bih"], params["enc_bhh"],
        params["wenc_t"], params["wdec_t"], params["va_row"],
        params["comb_we_t"], params["comb_wc_t"], params["comb_b"],
        params["dec_wih_t"], params["dec_whh_t"], params["dec_bih"], params["dec_bhh"],
    )

    grid_spec = pltpu.PrefetchScalarGridSpec(
        num_scalar_prefetch=0,
        grid=(1,),                                     # single invocation; loop is in-kernel
        in_specs=[_full_spec(op.shape) for op in operands],
        out_specs=(
            pl.BlockSpec((max_length, 1), lambda i: (0, 0)),
            pl.BlockSpec((max_length, S), lambda i: (0, 0)),
        ),
    )

    kernel = functools.partial(fused_seq2seq_kernel, sos_token=sos_token)
    return pl.pallas_call(
        kernel,
        out_shape=(
            jax.ShapeDtypeStruct((max_length, 1), jnp.int32),     # per-step token ids
            jax.ShapeDtypeStruct((max_length, S), jnp.float32),   # lane-dense attention rows
        ),
        grid_spec=grid_spec,
        compiler_params=pltpu.CompilerParams(dimension_semantics=("arbitrary",)),
    )(*operands)


# ----------------------------- parameter init -----------------------------
def _uniform(key, shape, fan_in):
    bound = 1.0 / math.sqrt(fan_in)
    return jax.random.uniform(key, shape, jnp.float32, -bound, bound)


def init_params(key, H, E, enc_vocab, dec_vocab):
    bf16 = jnp.bfloat16
    ks = iter(jax.random.split(key, 24))
    p = {}
    # Encoder
    p["emb_enc"] = jax.random.normal(next(ks), (enc_vocab, E), jnp.float32)
    p["enc_wih_t"] = _uniform(next(ks), (3 * H, E), H).T.astype(bf16)    # (E, 3H) [r|z|n]
    p["enc_whh_t"] = _uniform(next(ks), (3 * H, H), H).T.astype(bf16)    # (H, 3H)
    p["enc_bih"] = _uniform(next(ks), (3 * H,), H).reshape(1, 3 * H)
    p["enc_bhh"] = _uniform(next(ks), (3 * H,), H).reshape(1, 3 * H)
    # Decoder embedding: nn.Embedding(vocab_len, hidden_size)
    p["emb_dec"] = jax.random.normal(next(ks), (dec_vocab, H), jnp.float32)
    # Decoder GRU(E -> H)
    p["dec_wih_t"] = _uniform(next(ks), (3 * H, E), H).T.astype(bf16)
    p["dec_whh_t"] = _uniform(next(ks), (3 * H, H), H).T.astype(bf16)
    p["dec_bih"] = _uniform(next(ks), (3 * H,), H).reshape(1, 3 * H)
    p["dec_bhh"] = _uniform(next(ks), (3 * H,), H).reshape(1, 3 * H)
    # Attention
    p["wenc_t"] = _uniform(next(ks), (H, H), H).T.astype(bf16)
    p["wdec_t"] = _uniform(next(ks), (H, H), H).T.astype(bf16)
    p["va_row"] = _uniform(next(ks), (1, H), H).astype(bf16)             # va as a (1, H) row
    # attention_combiner: Linear(2H -> E); split into embedded / context halves
    comb_w = _uniform(next(ks), (E, 2 * H), 2 * H)
    p["comb_we_t"] = comb_w[:, :H].T.astype(bf16)
    p["comb_wc_t"] = comb_w[:, H:].T.astype(bf16)
    p["comb_b"] = _uniform(next(ks), (1, E), 2 * H)
    # decoded_word_output: Linear(H -> dec_vocab).  Mathematically dead in the forward:
    # log_softmax(dim=1) over a singleton axis is exactly 0, so this projection never
    # influences any returned value.  Kept only for module parity; never sent to the kernel.
    p["out_w_t"] = _uniform(next(ks), (dec_vocab, H), H).T
    p["out_b"] = _uniform(next(ks), (1, dec_vocab), H)
    return p


# ----------------------------- Seq2Seq forward (eval path) -----------------------------
def seq2seq_forward(params, encoder_input, attention_mask, sos_token, eos_token,
                    max_length):
    # TODO(synk): training / teacher-forcing branch not implemented (eval path only).
    S = encoder_input.shape[0]
    V = params["out_b"].shape[1]
    emb_enc = params["emb_enc"][encoder_input]                 # embedding lookup (glue)
    mask_row = attention_mask.astype(jnp.int32).reshape(1, S)

    tokens, attn = run_seq2seq(params, emb_enc, mask_row,
                               max_length=max_length, sos_token=int(sos_token))

    # PyTorch: F.log_softmax(decoded_word_output(out), dim=1) on a (1, 1, V) tensor
    # normalizes over a singleton axis -> exactly zeros; no kernel work needed.
    logp = jnp.zeros((max_length, 1, V), jnp.float32)

    # Single device->host read (instead of one blocking .item() per step) to reproduce the
    # PyTorch early `break` on eos: truncate at the first eos-producing step.
    toks_host = jax.device_get(tokens).reshape(-1)
    n_steps = max_length
    for i in range(max_length):
        if int(toks_host[i]) == eos_token:
            n_steps = i + 1
            break

    decoded_tokens = [tokens[i].reshape(1, 1, 1) for i in range(n_steps)]   # each (1, 1, 1)
    attn_seq = [attn[i].reshape(1, S, 1) for i in range(n_steps)]           # each (1, S, 1)
    logit_seq = [logp[i:i + 1] for i in range(n_steps)]                     # each (1, 1, V)
    return decoded_tokens, attn_seq, logit_seq


# ----------------------------- main -----------------------------
if __name__ == "__main__":
    H, E, S = 32, 32, 8
    ENC_VOCAB, DEC_VOCAB = 50, 40       # DEC_VOCAB >= H so topk-over-hidden ids are valid
    MAX_LENGTH = 4
    decoder_sos_token, decoder_eos_token = 1, 2
    # Seq2Seq.__init__ passes (eos, sos) into Decoder's (sos, eos) slots; reproduce it:
    sos_used, eos_used = decoder_eos_token, decoder_sos_token

    key = jax.random.PRNGKey(0)
    pkey, ikey = jax.random.split(key)
    params = init_params(pkey, H, E, ENC_VOCAB, DEC_VOCAB)

    encoder_input = jax.random.randint(ikey, (S,), 0, ENC_VOCAB, jnp.int32)
    attention_mask = jnp.array([1, 1, 1, 1, 1, 1, 0, 0], dtype=jnp.bool_)

    tokens, attns, logits = seq2seq_forward(
        params, encoder_input, attention_mask, sos_used, eos_used, MAX_LENGTH)

    jax.block_until_ready((tokens, attns, logits))
    print("KERNEL_OK")
</pallas_src>

<mosaic_0001>
module attributes {stable_mosaic.version = 11 : i64} {
  func.func @fused_seq2seq_kernel(%arg0: i32, %arg1: memref<8x32xf32, #tpu.memory_space<vmem>>, %arg2: memref<1x8xi32, #tpu.memory_space<vmem>>, %arg3: memref<40x32xf32, #tpu.memory_space<vmem>>, %arg4: memref<32x96xbf16, #tpu.memory_space<vmem>>, %arg5: memref<32x96xbf16, #tpu.memory_space<vmem>>, %arg6: memref<1x96xf32, #tpu.memory_space<vmem>>, %arg7: memref<1x96xf32, #tpu.memory_space<vmem>>, %arg8: memref<32x32xbf16, #tpu.memory_space<vmem>>, %arg9: memref<32x32xbf16, #tpu.memory_space<vmem>>, %arg10: memref<1x32xbf16, #tpu.memory_space<vmem>>, %arg11: memref<32x32xbf16, #tpu.memory_space<vmem>>, %arg12: memref<32x32xbf16, #tpu.memory_space<vmem>>, %arg13: memref<1x32xf32, #tpu.memory_space<vmem>>, %arg14: memref<32x96xbf16, #tpu.memory_space<vmem>>, %arg15: memref<32x96xbf16, #tpu.memory_space<vmem>>, %arg16: memref<1x96xf32, #tpu.memory_space<vmem>>, %arg17: memref<1x96xf32, #tpu.memory_space<vmem>>, %arg18: memref<4x1xi32, #tpu.memory_space<vmem>>, %arg19: memref<4x8xf32, #tpu.memory_space<vmem>>) attributes {dimension_semantics = [#tpu.dimension_semantics<arbitrary>], iteration_bounds = array<i64: 1>, scalar_prefetch = 0 : i64, scratch_operands = 0 : i64, tpu.core_type = #tpu.core_type<tc>, window_params = [{pipeline_mode = #tpu.pipeline_mode<synchronous>, transform_indices = @transform_0, window_bounds = array<i64: 8, 32>}, {pipeline_mode = #tpu.pipeline_mode<synchronous>, transform_indices = @transform_1, window_bounds = array<i64: 1, 8>}, {pipeline_mode = #tpu.pipeline_mode<synchronous>, transform_indices = @transform_2, window_bounds = array<i64: 40, 32>}, {pipeline_mode = #tpu.pipeline_mode<synchronous>, transform_indices = @transform_3, window_bounds = array<i64: 32, 96>}, {pipeline_mode = #tpu.pipeline_mode<synchronous>, transform_indices = @transform_4, window_bounds = array<i64: 32, 96>}, {pipeline_mode = #tpu.pipeline_mode<synchronous>, transform_indices = @transform_5, window_bounds = array<i64: 1, 96>}, {pipeline_mode = #tpu.pipeline_mode<synchronous>, transform_indices = @transform_6, window_bounds = array<i64: 1, 96>}, {pipeline_mode = #tpu.pipeline_mode<synchronous>, transform_indices = @transform_7, window_bounds = array<i64: 32, 32>}, {pipeline_mode = #tpu.pipeline_mode<synchronous>, transform_indices = @transform_8, window_bounds = array<i64: 32, 32>}, {pipeline_mode = #tpu.pipeline_mode<synchronous>, transform_indices = @transform_9, window_bounds = array<i64: 1, 32>}, {pipeline_mode = #tpu.pipeline_mode<synchronous>, transform_indices = @transform_10, window_bounds = array<i64: 32, 32>}, {pipeline_mode = #tpu.pipeline_mode<synchronous>, transform_indices = @transform_11, window_bounds = array<i64: 32, 32>}, {pipeline_mode = #tpu.pipeline_mode<synchronous>, transform_indices = @transform_12, window_bounds = array<i64: 1, 32>}, {pipeline_mode = #tpu.pipeline_mode<synchronous>, transform_indices = @transform_13, window_bounds = array<i64: 32, 96>}, {pipeline_mode = #tpu.pipeline_mode<synchronous>, transform_indices = @transform_14, window_bounds = array<i64: 32, 96>}, {pipeline_mode = #tpu.pipeline_mode<synchronous>, transform_indices = @transform_15, window_bounds = array<i64: 1, 96>}, {pipeline_mode = #tpu.pipeline_mode<synchronous>, transform_indices = @transform_16, window_bounds = array<i64: 1, 96>}, {pipeline_mode = #tpu.pipeline_mode<synchronous>, transform_indices = @transform_17, window_bounds = array<i64: 4, 1>}, {pipeline_mode = #tpu.pipeline_mode<synchronous>, transform_indices = @transform_18, window_bounds = array<i64: 4, 8>}]} {
    %c0 = arith.constant 0 : index
    %c0_0 = arith.constant 0 : index
    %0 = vector.load %arg2[%c0, %c0_0] : memref<1x8xi32, #tpu.memory_space<vmem>>, vector<1x8xi32>
    %c0_1 = arith.constant 0 : index
    %c0_2 = arith.constant 0 : index
    %1 = vector.load %arg3[%c0_1, %c0_2] : memref<40x32xf32, #tpu.memory_space<vmem>>, vector<40x32xf32>
    %c0_3 = arith.constant 0 : index
    %c0_4 = arith.constant 0 : index
    %2 = vector.load %arg9[%c0_3, %c0_4] : memref<32x32xbf16, #tpu.memory_space<vmem>>, vector<32x32xbf16>
    %c0_5 = arith.constant 0 : index
    %c0_6 = arith.constant 0 : index
    %3 = vector.load %arg10[%c0_5, %c0_6] : memref<1x32xbf16, #tpu.memory_space<vmem>>, vector<1x32xbf16>
    %c0_7 = arith.constant 0 : index
    %c0_8 = arith.constant 0 : index
    %4 = vector.load %arg11[%c0_7, %c0_8] : memref<32x32xbf16, #tpu.memory_space<vmem>>, vector<32x32xbf16>
    %c0_9 = arith.constant 0 : index
    %c0_10 = arith.constant 0 : index
    %5 = vector.load %arg12[%c0_9, %c0_10] : memref<32x32xbf16, #tpu.memory_space<vmem>>, vector<32x32xbf16>
    %c0_11 = arith.constant 0 : index
    %c0_12 = arith.constant 0 : index
    %6 = vector.load %arg13[%c0_11, %c0_12] : memref<1x32xf32, #tpu.memory_space<vmem>>, vector<1x32xf32>
    %c0_13 = arith.constant 0 : index
    %c0_14 = arith.constant 0 : index
    %7 = vector.load %arg14[%c0_13, %c0_14] : memref<32x96xbf16, #tpu.memory_space<vmem>>, vector<32x96xbf16>
    %c0_15 = arith.constant 0 : index
    %c0_16 = arith.constant 0 : index
    %8 = vector.load %arg15[%c0_15, %c0_16] : memref<32x96xbf16, #tpu.memory_space<vmem>>, vector<32x96xbf16>
    %c0_17 = arith.constant 0 : index
    %c0_18 = arith.constant 0 : index
    %9 = vector.load %arg16[%c0_17, %c0_18] : memref<1x96xf32, #tpu.memory_space<vmem>>, vector<1x96xf32>
    %c0_19 = arith.constant 0 : index
    %c0_20 = arith.constant 0 : index
    %10 = vector.load %arg17[%c0_19, %c0_20] : memref<1x96xf32, #tpu.memory_space<vmem>>, vector<1x96xf32>
    %11 = tpu.iota {dimensions = array<i32: 1>} : vector<1x40xi32>
    %12 = tpu.iota {dimensions = array<i32: 1>} : vector<1x32xi32>
    %c0_21 = arith.constant 0 : index
    %c0_22 = arith.constant 0 : index
    %13 = vector.load %arg1[%c0_21, %c0_22] : memref<8x32xf32, #tpu.memory_space<vmem>>, vector<8x32xf32>
    %cst = arith.constant 0.000000e+00 : f32
    %14 = vector.broadcast %cst : f32 to vector<8x32xf32>
    %c0_23 = arith.constant 0 : index
    %c0_24 = arith.constant 0 : index
    %15 = vector.load %arg4[%c0_23, %c0_24] : memref<32x96xbf16, #tpu.memory_space<vmem>>, vector<32x96xbf16>
    %c0_25 = arith.constant 0 : index
    %c0_26 = arith.constant 0 : index
    %16 = vector.load %arg5[%c0_25, %c0_26] : memref<32x96xbf16, #tpu.memory_space<vmem>>, vector<32x96xbf16>
    %c0_27 = arith.constant 0 : index
    %c0_28 = arith.constant 0 : index
    %17 = vector.load %arg6[%c0_27, %c0_28] : memref<1x96xf32, #tpu.memory_space<vmem>>, vector<1x96xf32>
    %c0_29 = arith.constant 0 : index
    %c0_30 = arith.constant 0 : index
    %18 = vector.load %arg7[%c0_29, %c0_30] : memref<1x96xf32, #tpu.memory_space<vmem>>, vector<1x96xf32>
    %19 = arith.truncf %13 : vector<8x32xf32> to vector<8x32xbf16>
    %cst_31 = arith.constant dense<0.000000e+00> : vector<8x96xf32>
    %20 = tpu.matmul %19, %15, %cst_31 {dimension_numbers = #tpu.dot_dimension_numbers<[1], [0], [0], [1], [0, 0, 1, 1], [], []>} : vector<8x32xbf16>, vector<32x96xbf16>, vector<8x96xf32> -> vector<8x96xf32>
    %21 = vector.broadcast %17 : vector<1x96xf32> to vector<8x96xf32>
    %22 = arith.addf %20, %21 : vector<8x96xf32>
    %23 = arith.truncf %14 : vector<8x32xf32> to vector<8x32xbf16>
    %cst_32 = arith.constant dense<0.000000e+00> : vector<8x96xf32>
    %24 = tpu.matmul %23, %16, %cst_32 {dimension_numbers = #tpu.dot_dimension_numbers<[1], [0], [0], [1], [0, 0, 1, 1], [], []>} : vector<8x32xbf16>, vector<32x96xbf16>, vector<8x96xf32> -> vector<8x96xf32>
    %25 = vector.broadcast %18 : vector<1x96xf32> to vector<8x96xf32>
    %26 = arith.addf %24, %25 : vector<8x96xf32>
    %27 = vector.extract_strided_slice %22 {offsets = [0, 0], sizes = [8, 32], strides = [1, 1]} : vector<8x96xf32> to vector<8x32xf32>
    %28 = vector.extract_strided_slice %26 {offsets = [0, 0], sizes = [8, 32], strides = [1, 1]} : vector<8x96xf32> to vector<8x32xf32>
    %29 = arith.addf %27, %28 : vector<8x32xf32>
    %30 = arith.negf %29 : vector<8x32xf32>
    %31 = math.exp %30 : vector<8x32xf32>
    %cst_33 = arith.constant 1.000000e+00 : f32
    %32 = vector.broadcast %cst_33 : f32 to vector<8x32xf32>
    %33 = arith.addf %32, %31 : vector<8x32xf32>
    %34 = arith.divf %32, %33 : vector<8x32xf32>
    %35 = vector.extract_strided_slice %22 {offsets = [0, 32], sizes = [8, 32], strides = [1, 1]} : vector<8x96xf32> to vector<8x32xf32>
    %36 = vector.extract_strided_slice %26 {offsets = [0, 32], sizes = [8, 32], strides = [1, 1]} : vector<8x96xf32> to vector<8x32xf32>
    %37 = arith.addf %35, %36 : vector<8x32xf32>
    %38 = arith.negf %37 : vector<8x32xf32>
    %39 = math.exp %38 : vector<8x32xf32>
    %cst_34 = arith.constant 1.000000e+00 : f32
    %40 = vector.broadcast %cst_34 : f32 to vector<8x32xf32>
    %41 = arith.addf %40, %39 : vector<8x32xf32>
    %42 = arith.divf %40, %41 : vector<8x32xf32>
    %43 = vector.extract_strided_slice %22 {offsets = [0, 64], sizes = [8, 32], strides = [1, 1]} : vector<8x96xf32> to vector<8x32xf32>
    %44 = vector.extract_strided_slice %26 {offsets = [0, 64], sizes = [8, 32], strides = [1, 1]} : vector<8x96xf32> to vector<8x32xf32>
    %45 = arith.mulf %34, %44 : vector<8x32xf32>
    %46 = arith.addf %43, %45 : vector<8x32xf32>
    %47 = math.tanh %46 : vector<8x32xf32>
    %cst_35 = arith.constant 1.000000e+00 : f32
    %48 = vector.broadcast %cst_35 : f32 to vector<8x32xf32>
    %49 = arith.subf %48, %42 : vector<8x32xf32>
    %50 = arith.mulf %49, %47 : vector<8x32xf32>
    %51 = arith.mulf %42, %14 : vector<8x32xf32>
    %52 = arith.addf %50, %51 : vector<8x32xf32>
    %c0_36 = arith.constant 0 : index
    %c0_37 = arith.constant 0 : index
    %53 = vector.load %arg8[%c0_36, %c0_37] : memref<32x32xbf16, #tpu.memory_space<vmem>>, vector<32x32xbf16>
    %54 = arith.truncf %52 : vector<8x32xf32> to vector<8x32xbf16>
    %cst_38 = arith.constant dense<0.000000e+00> : vector<8x32xf32>
    %55 = tpu.matmul %54, %53, %cst_38 {dimension_numbers = #tpu.dot_dimension_numbers<[1], [0], [0], [1], [0, 0, 1, 1], [], []>} : vector<8x32xbf16>, vector<32x32xbf16>, vector<8x32xf32> -> vector<8x32xf32>
    %56 = vector.extract_strided_slice %52 {offsets = [7, 0], sizes = [1, 32], strides = [1, 1]} : vector<8x32xf32> to vector<1x32xf32>
    %c2_i32 = arith.constant 2 : i32
    %57 = vector.broadcast %c2_i32 : i32 to vector<1x1xi32>
    %c0_i32 = arith.constant 0 : i32
    %58 = vector.broadcast %57 : vector<1x1xi32> to vector<1x40xi32>
    %59 = arith.cmpi eq, %11, %58 : vector<1x40xi32>
    %60 = arith.extui %59 : vector<1x40xi1> to vector<1x40xi32>
    %61 = arith.sitofp %60 : vector<1x40xi32> to vector<1x40xf32>
    %cst_39 = arith.constant dense<0.000000e+00> : vector<1x32xf32>
    %62 = tpu.matmul %61, %1, %cst_39 {dimension_numbers = #tpu.dot_dimension_numbers<[1], [0], [0], [1], [0, 0, 1, 1], [], []>} : vector<1x40xf32>, vector<40x32xf32>, vector<1x32xf32> -> vector<1x32xf32>
    %63 = arith.truncf %56 : vector<1x32xf32> to vector<1x32xbf16>
    %cst_40 = arith.constant dense<0.000000e+00> : vector<1x32xf32>
    %64 = tpu.matmul %63, %2, %cst_40 {dimension_numbers = #tpu.dot_dimension_numbers<[1], [0], [0], [1], [0, 0, 1, 1], [], []>} : vector<1x32xbf16>, vector<32x32xbf16>, vector<1x32xf32> -> vector<1x32xf32>
    %65 = vector.broadcast %64 : vector<1x32xf32> to vector<8x32xf32>
    %66 = arith.addf %65, %55 : vector<8x32xf32>
    %67 = math.tanh %66 : vector<8x32xf32>
    %68 = arith.truncf %67 : vector<8x32xf32> to vector<8x32xbf16>
    %cst_41 = arith.constant dense<0.000000e+00> : vector<1x8xf32>
    %69 = tpu.matmul %3, %68, %cst_41 {dimension_numbers = #tpu.dot_dimension_numbers<[1], [1], [0], [0], [0, 0, 1, 0], [], []>} : vector<1x32xbf16>, vector<8x32xbf16>, vector<1x8xf32> -> vector<1x8xf32>
    %c0_i32_42 = arith.constant 0 : i32
    %70 = vector.broadcast %c0_i32_42 : i32 to vector<1x8xi32>
    %71 = arith.cmpi ne, %0, %70 : vector<1x8xi32>
    %cst_43 = arith.constant 0xFF800000 : f32
    %72 = vector.broadcast %cst_43 : f32 to vector<1x8xf32>
    %73 = arith.select %71, %69, %72 : vector<1x8xi1>, vector<1x8xf32>
    %cst_44 = arith.constant dense<0xFF800000> : vector<1xf32>
    %74 = vector.multi_reduction <maximumf>, %73, %cst_44 [1] : vector<1x8xf32> to vector<1xf32>
    %75 = vector.shape_cast %74 : vector<1xf32> to vector<1x1xf32>
    %76 = vector.broadcast %75 : vector<1x1xf32> to vector<1x8xf32>
    %77 = arith.subf %73, %76 : vector<1x8xf32>
    %78 = math.exp %77 : vector<1x8xf32>
    %cst_45 = arith.constant dense<0.000000e+00> : vector<1xf32>
    %79 = vector.multi_reduction <add>, %78, %cst_45 [1] : vector<1x8xf32> to vector<1xf32>
    %80 = vector.shape_cast %79 : vector<1xf32> to vector<1x1xf32>
    %81 = vector.broadcast %80 : vector<1x1xf32> to vector<1x8xf32>
    %82 = arith.divf %78, %81 : vector<1x8xf32>
    %cst_46 = arith.constant dense<0.000000e+00> : vector<1x32xf32>
    %83 = tpu.matmul %82, %52, %cst_46 {dimension_numbers = #tpu.dot_dimension_numbers<[1], [0], [0], [1], [0, 0, 1, 1], [], []>} : vector<1x8xf32>, vector<8x32xf32>, vector<1x32xf32> -> vector<1x32xf32>
    %84 = arith.truncf %62 : vector<1x32xf32> to vector<1x32xbf16>
    %cst_47 = arith.constant dense<0.000000e+00> : vector<1x32xf32>
    %85 = tpu.matmul %84, %4, %cst_47 {dimension_numbers = #tpu.dot_dimension_numbers<[1], [0], [0], [1], [0, 0, 1, 1], [], []>} : vector<1x32xbf16>, vector<32x32xbf16>, vector<1x32xf32> -> vector<1x32xf32>
    %86 = arith.truncf %83 : vector<1x32xf32> to vector<1x32xbf16>
    %cst_48 = arith.constant dense<0.000000e+00> : vector<1x32xf32>
    %87 = tpu.matmul %86, %5, %cst_48 {dimension_numbers = #tpu.dot_dimension_numbers<[1], [0], [0], [1], [0, 0, 1, 1], [], []>} : vector<1x32xbf16>, vector<32x32xbf16>, vector<1x32xf32> -> vector<1x32xf32>
    %88 = arith.addf %85, %87 : vector<1x32xf32>
    %89 = arith.addf %88, %6 : vector<1x32xf32>
    %cst_49 = arith.constant 0.000000e+00 : f32
    %90 = vector.broadcast %cst_49 : f32 to vector<1x32xf32>
    %91 = arith.maximumf %89, %90 : vector<1x32xf32>
    %92 = arith.truncf %91 : vector<1x32xf32> to vector<1x32xbf16>
    %cst_50 = arith.constant dense<0.000000e+00> : vector<1x96xf32>
    %93 = tpu.matmul %92, %7, %cst_50 {dimension_numbers = #tpu.dot_dimension_numbers<[1], [0], [0], [1], [0, 0, 1, 1], [], []>} : vector<1x32xbf16>, vector<32x96xbf16>, vector<1x96xf32> -> vector<1x96xf32>
    %94 = arith.addf %93, %9 : vector<1x96xf32>
    %95 = arith.truncf %56 : vector<1x32xf32> to vector<1x32xbf16>
    %cst_51 = arith.constant dense<0.000000e+00> : vector<1x96xf32>
    %96 = tpu.matmul %95, %8, %cst_51 {dimension_numbers = #tpu.dot_dimension_numbers<[1], [0], [0], [1], [0, 0, 1, 1], [], []>} : vector<1x32xbf16>, vector<32x96xbf16>, vector<1x96xf32> -> vector<1x96xf32>
    %97 = arith.addf %96, %10 : vector<1x96xf32>
    %98 = vector.extract_strided_slice %94 {offsets = [0, 0], sizes = [1, 32], strides = [1, 1]} : vector<1x96xf32> to vector<1x32xf32>
    %99 = vector.extract_strided_slice %97 {offsets = [0, 0], sizes = [1, 32], strides = [1, 1]} : vector<1x96xf32> to vector<1x32xf32>
    %100 = arith.addf %98, %99 : vector<1x32xf32>
    %101 = arith.negf %100 : vector<1x32xf32>
    %102 = math.exp %101 : vector<1x32xf32>
    %cst_52 = arith.constant 1.000000e+00 : f32
    %103 = vector.broadcast %cst_52 : f32 to vector<1x32xf32>
    %104 = arith.addf %103, %102 : vector<1x32xf32>
    %105 = arith.divf %103, %104 : vector<1x32xf32>
    %106 = vector.extract_strided_slice %94 {offsets = [0, 32], sizes = [1, 32], strides = [1, 1]} : vector<1x96xf32> to vector<1x32xf32>
    %107 = vector.extract_strided_slice %97 {offsets = [0, 32], sizes = [1, 32], strides = [1, 1]} : vector<1x96xf32> to vector<1x32xf32>
    %108 = arith.addf %106, %107 : vector<1x32xf32>
    %109 = arith.negf %108 : vector<1x32xf32>
    %110 = math.exp %109 : vector<1x32xf32>
    %cst_53 = arith.constant 1.000000e+00 : f32
    %111 = vector.broadcast %cst_53 : f32 to vector<1x32xf32>
    %112 = arith.addf %111, %110 : vector<1x32xf32>
    %113 = arith.divf %111, %112 : vector<1x32xf32>
    %114 = vector.extract_strided_slice %94 {offsets = [0, 64], sizes = [1, 32], strides = [1, 1]} : vector<1x96xf32> to vector<1x32xf32>
    %115 = vector.extract_strided_slice %97 {offsets = [0, 64], sizes = [1, 32], strides = [1, 1]} : vector<1x96xf32> to vector<1x32xf32>
    %116 = arith.mulf %105, %115 : vector<1x32xf32>
    %117 = arith.addf %114, %116 : vector<1x32xf32>
    %118 = math.tanh %117 : vector<1x32xf32>
    %cst_54 = arith.constant 1.000000e+00 : f32
    %119 = vector.broadcast %cst_54 : f32 to vector<1x32xf32>
    %120 = arith.subf %119, %113 : vector<1x32xf32>
    %121 = arith.mulf %120, %118 : vector<1x32xf32>
    %122 = arith.mulf %113, %56 : vector<1x32xf32>
    %123 = arith.addf %121, %122 : vector<1x32xf32>
    %cst_55 = arith.constant dense<0xFF800000> : vector<1xf32>
    %124 = vector.multi_reduction <maximumf>, %123, %cst_55 [1] : vector<1x32xf32> to vector<1xf32>
    %125 = vector.shape_cast %124 : vector<1xf32> to vector<1x1xf32>
    %126 = vector.broadcast %125 : vector<1x1xf32> to vector<1x32xf32>
    %127 = arith.cmpf oeq, %123, %126 : vector<1x32xf32>
    %c32_i32 = arith.constant 32 : i32
    %128 = vector.broadcast %c32_i32 : i32 to vector<1x32xi32>
    %129 = arith.select %127, %12, %128 : vector<1x32xi1>, vector<1x32xi32>
    %cst_56 = arith.constant dense<2147483647> : vector<1xi32>
    %130 = vector.multi_reduction <minsi>, %129, %cst_56 [1] : vector<1x32xi32> to vector<1xi32>
    %131 = vector.shape_cast %130 : vector<1xi32> to vector<1x1xi32>
    %132 = arith.index_cast %c0_i32 : i32 to index
    %c0_57 = arith.constant 0 : index
    %133 = vector.load %arg18[%132, %c0_57] : memref<4x1xi32, #tpu.memory_space<vmem>>, vector<1x1xi32>
    tpu.vector_store %arg18[%132, %c0_57], %131 {strides = array<i32>} : memref<4x1xi32, #tpu.memory_space<vmem>>, vector<1x1xi32>,
    %134 = arith.index_cast %c0_i32 : i32 to index
    %c0_58 = arith.constant 0 : index
    %135 = vector.load %arg19[%134, %c0_58] : memref<4x8xf32, #tpu.memory_space<vmem>>, vector<1x8xf32>
    tpu.vector_store %arg19[%134, %c0_58], %82 {strides = array<i32>} : memref<4x8xf32, #tpu.memory_space<vmem>>, vector<1x8xf32>,
    %c1_i32 = arith.constant 1 : i32
    %136 = vector.broadcast %131 : vector<1x1xi32> to vector<1x40xi32>
    %137 = arith.cmpi eq, %11, %136 : vector<1x40xi32>
    %138 = arith.extui %137 : vector<1x40xi1> to vector<1x40xi32>
    %139 = arith.sitofp %138 : vector<1x40xi32> to vector<1x40xf32>
    %cst_59 = arith.constant dense<0.000000e+00> : vector<1x32xf32>
    %140 = tpu.matmul %139, %1, %cst_59 {dimension_numbers = #tpu.dot_dimension_numbers<[1], [0], [0], [1], [0, 0, 1, 1], [], []>} : vector<1x40xf32>, vector<40x32xf32>, vector<1x32xf32> -> vector<1x32xf32>
    %141 = arith.truncf %123 : vector<1x32xf32> to vector<1x32xbf16>
    %cst_60 = arith.constant dense<0.000000e+00> : vector<1x32xf32>
    %142 = tpu.matmul %141, %2, %cst_60 {dimension_numbers = #tpu.dot_dimension_numbers<[1], [0], [0], [1], [0, 0, 1, 1], [], []>} : vector<1x32xbf16>, vector<32x32xbf16>, vector<1x32xf32> -> vector<1x32xf32>
    %143 = vector.broadcast %142 : vector<1x32xf32> to vector<8x32xf32>
    %144 = arith.addf %143, %55 : vector<8x32xf32>
    %145 = math.tanh %144 : vector<8x32xf32>
    %146 = arith.truncf %145 : vector<8x32xf32> to vector<8x32xbf16>
    %cst_61 = arith.constant dense<0.000000e+00> : vector<1x8xf32>
    %147 = tpu.matmul %3, %146, %cst_61 {dimension_numbers = #tpu.dot_dimension_numbers<[1], [1], [0], [0], [0, 0, 1, 0], [], []>} : vector<1x32xbf16>, vector<8x32xbf16>, vector<1x8xf32> -> vector<1x8xf32>
    %c0_i32_62 = arith.constant 0 : i32
    %148 = vector.broadcast %c0_i32_62 : i32 to vector<1x8xi32>
    %149 = arith.cmpi ne, %0, %148 : vector<1x8xi32>
    %cst_63 = arith.constant 0xFF800000 : f32
    %150 = vector.broadcast %cst_63 : f32 to vector<1x8xf32>
    %151 = arith.select %149, %147, %150 : vector<1x8xi1>, vector<1x8xf32>
    %cst_64 = arith.constant dense<0xFF800000> : vector<1xf32>
    %152 = vector.multi_reduction <maximumf>, %151, %cst_64 [1] : vector<1x8xf32> to vector<1xf32>
    %153 = vector.shape_cast %152 : vector<1xf32> to vector<1x1xf32>
    %154 = vector.broadcast %153 : vector<1x1xf32> to vector<1x8xf32>
    %155 = arith.subf %151, %154 : vector<1x8xf32>
    %156 = math.exp %155 : vector<1x8xf32>
    %cst_65 = arith.constant dense<0.000000e+00> : vector<1xf32>
    %157 = vector.multi_reduction <add>, %156, %cst_65 [1] : vector<1x8xf32> to vector<1xf32>
    %158 = vector.shape_cast %157 : vector<1xf32> to vector<1x1xf32>
    %159 = vector.broadcast %158 : vector<1x1xf32> to vector<1x8xf32>
    %160 = arith.divf %156, %159 : vector<1x8xf32>
    %cst_66 = arith.constant dense<0.000000e+00> : vector<1x32xf32>
    %161 = tpu.matmul %160, %52, %cst_66 {dimension_numbers = #tpu.dot_dimension_numbers<[1], [0], [0], [1], [0, 0, 1, 1], [], []>} : vector<1x8xf32>, vector<8x32xf32>, vector<1x32xf32> -> vector<1x32xf32>
    %162 = arith.truncf %140 : vector<1x32xf32> to vector<1x32xbf16>
    %cst_67 = arith.constant dense<0.000000e+00> : vector<1x32xf32>
    %163 = tpu.matmul %162, %4, %cst_67 {dimension_numbers = #tpu.dot_dimension_numbers<[1], [0], [0], [1], [0, 0, 1, 1], [], []>} : vector<1x32xbf16>, vector<32x32xbf16>, vector<1x32xf32> -> vector<1x32xf32>
    %164 = arith.truncf %161 : vector<1x32xf32> to vector<1x32xbf16>
    %cst_68 = arith.constant dense<0.000000e+00> : vector<1x32xf32>
    %165 = tpu.matmul %164, %5, %cst_68 {dimension_numbers = #tpu.dot_dimension_numbers<[1], [0], [0], [1], [0, 0, 1, 1], [], []>} : vector<1x32xbf16>, vector<32x32xbf16>, vector<1x32xf32> -> vector<1x32xf32>
    %166 = arith.addf %163, %165 : vector<1x32xf32>
    %167 = arith.addf %166, %6 : vector<1x32xf32>
    %cst_69 = arith.constant 0.000000e+00 : f32
    %168 = vector.broadcast %cst_69 : f32 to vector<1x32xf32>
    %169 = arith.maximumf %167, %168 : vector<1x32xf32>
    %170 = arith.truncf %169 : vector<1x32xf32> to vector<1x32xbf16>
    %cst_70 = arith.constant dense<0.000000e+00> : vector<1x96xf32>
    %171 = tpu.matmul %170, %7, %cst_70 {dimension_numbers = #tpu.dot_dimension_numbers<[1], [0], [0], [1], [0, 0, 1, 1], [], []>} : vector<1x32xbf16>, vector<32x96xbf16>, vector<1x96xf32> -> vector<1x96xf32>
    %172 = arith.addf %171, %9 : vector<1x96xf32>
    %173 = arith.truncf %123 : vector<1x32xf32> to vector<1x32xbf16>
    %cst_71 = arith.constant dense<0.000000e+00> : vector<1x96xf32>
    %174 = tpu.matmul %173, %8, %cst_71 {dimension_numbers = #tpu.dot_dimension_numbers<[1], [0], [0], [1], [0, 0, 1, 1], [], []>} : vector<1x32xbf16>, vector<32x96xbf16>, vector<1x96xf32> -> vector<1x96xf32>
    %175 = arith.addf %174, %10 : vector<1x96xf32>
    %176 = vector.extract_strided_slice %172 {offsets = [0, 0], sizes = [1, 32], strides = [1, 1]} : vector<1x96xf32> to vector<1x32xf32>
    %177 = vector.extract_strided_slice %175 {offsets = [0, 0], sizes = [1, 32], strides = [1, 1]} : vector<1x96xf32> to vector<1x32xf32>
    %178 = arith.addf %176, %177 : vector<1x32xf32>
    %179 = arith.negf %178 : vector<1x32xf32>
    %180 = math.exp %179 : vector<1x32xf32>
    %cst_72 = arith.constant 1.000000e+00 : f32
    %181 = vector.broadcast %cst_72 : f32 to vector<1x32xf32>
    %182 = arith.addf %181, %180 : vector<1x32xf32>
    %183 = arith.divf %181, %182 : vector<1x32xf32>
    %184 = vector.extract_strided_slice %172 {offsets = [0, 32], sizes = [1, 32], strides = [1, 1]} : vector<1x96xf32> to vector<1x32xf32>
    %185 = vector.extract_strided_slice %175 {offsets = [0, 32], sizes = [1, 32], strides = [1, 1]} : vector<1x96xf32> to vector<1x32xf32>
    %186 = arith.addf %184, %185 : vector<1x32xf32>
    %187 = arith.negf %186 : vector<1x32xf32>
    %188 = math.exp %187 : vector<1x32xf32>
    %cst_73 = arith.constant 1.000000e+00 : f32
    %189 = vector.broadcast %cst_73 : f32 to vector<1x32xf32>
    %190 = arith.addf %189, %188 : vector<1x32xf32>
    %191 = arith.divf %189, %190 : vector<1x32xf32>
    %192 = vector.extract_strided_slice %172 {offsets = [0, 64], sizes = [1, 32], strides = [1, 1]} : vector<1x96xf32> to vector<1x32xf32>
    %193 = vector.extract_strided_slice %175 {offsets = [0, 64], sizes = [1, 32], strides = [1, 1]} : vector<1x96xf32> to vector<1x32xf32>
    %194 = arith.mulf %183, %193 : vector<1x32xf32>
    %195 = arith.addf %192, %194 : vector<1x32xf32>
    %196 = math.tanh %195 : vector<1x32xf32>
    %cst_74 = arith.constant 1.000000e+00 : f32
    %197 = vector.broadcast %cst_74 : f32 to vector<1x32xf32>
    %198 = arith.subf %197, %191 : vector<1x32xf32>
    %199 = arith.mulf %198, %196 : vector<1x32xf32>
    %200 = arith.mulf %191, %123 : vector<1x32xf32>
    %201 = arith.addf %199, %200 : vector<1x32xf32>
    %cst_75 = arith.constant dense<0xFF800000> : vector<1xf32>
    %202 = vector.multi_reduction <maximumf>, %201, %cst_75 [1] : vector<1x32xf32> to vector<1xf32>
    %203 = vector.shape_cast %202 : vector<1xf32> to vector<1x1xf32>
    %204 = vector.broadcast %203 : vector<1x1xf32> to vector<1x32xf32>
    %205 = arith.cmpf oeq, %201, %204 : vector<1x32xf32>
    %c32_i32_76 = arith.constant 32 : i32
    %206 = vector.broadcast %c32_i32_76 : i32 to vector<1x32xi32>
    %207 = arith.select %205, %12, %206 : vector<1x32xi1>, vector<1x32xi32>
    %cst_77 = arith.constant dense<2147483647> : vector<1xi32>
    %208 = vector.multi_reduction <minsi>, %207, %cst_77 [1] : vector<1x32xi32> to vector<1xi32>
    %209 = vector.shape_cast %208 : vector<1xi32> to vector<1x1xi32>
    %210 = arith.index_cast %c1_i32 : i32 to index
    %c0_78 = arith.constant 0 : index
    %211 = vector.load %arg18[%210, %c0_78] : memref<4x1xi32, #tpu.memory_space<vmem>>, vector<1x1xi32>
    tpu.vector_store %arg18[%210, %c0_78], %209 {strides = array<i32>} : memref<4x1xi32, #tpu.memory_space<vmem>>, vector<1x1xi32>,
    %212 = arith.index_cast %c1_i32 : i32 to index
    %c0_79 = arith.constant 0 : index
    %213 = vector.load %arg19[%212, %c0_79] : memref<4x8xf32, #tpu.memory_space<vmem>>, vector<1x8xf32>
    tpu.vector_store %arg19[%212, %c0_79], %160 {strides = array<i32>} : memref<4x8xf32, #tpu.memory_space<vmem>>, vector<1x8xf32>,
    %c2_i32_80 = arith.constant 2 : i32
    %214 = vector.broadcast %209 : vector<1x1xi32> to vector<1x40xi32>
    %215 = arith.cmpi eq, %11, %214 : vector<1x40xi32>
    %216 = arith.extui %215 : vector<1x40xi1> to vector<1x40xi32>
    %217 = arith.sitofp %216 : vector<1x40xi32> to vector<1x40xf32>
    %cst_81 = arith.constant dense<0.000000e+00> : vector<1x32xf32>
    %218 = tpu.matmul %217, %1, %cst_81 {dimension_numbers = #tpu.dot_dimension_numbers<[1], [0], [0], [1], [0, 0, 1, 1], [], []>} : vector<1x40xf32>, vector<40x32xf32>, vector<1x32xf32> -> vector<1x32xf32>
    %219 = arith.truncf %201 : vector<1x32xf32> to vector<1x32xbf16>
    %cst_82 = arith.constant dense<0.000000e+00> : vector<1x32xf32>
    %220 = tpu.matmul %219, %2, %cst_82 {dimension_numbers = #tpu.dot_dimension_numbers<[1], [0], [0], [1], [0, 0, 1, 1], [], []>} : vector<1x32xbf16>, vector<32x32xbf16>, vector<1x32xf32> -> vector<1x32xf32>
    %221 = vector.broadcast %220 : vector<1x32xf32> to vector<8x32xf32>
    %222 = arith.addf %221, %55 : vector<8x32xf32>
    %223 = math.tanh %222 : vector<8x32xf32>
    %224 = arith.truncf %223 : vector<8x32xf32> to vector<8x32xbf16>
    %cst_83 = arith.constant dense<0.000000e+00> : vector<1x8xf32>
    %225 = tpu.matmul %3, %224, %cst_83 {dimension_numbers = #tpu.dot_dimension_numbers<[1], [1], [0], [0], [0, 0, 1, 0], [], []>} : vector<1x32xbf16>, vector<8x32xbf16>, vector<1x8xf32> -> vector<1x8xf32>
    %c0_i32_84 = arith.constant 0 : i32
    %226 = vector.broadcast %c0_i32_84 : i32 to vector<1x8xi32>
    %227 = arith.cmpi ne, %0, %226 : vector<1x8xi32>
    %cst_85 = arith.constant 0xFF800000 : f32
    %228 = vector.broadcast %cst_85 : f32 to vector<1x8xf32>
    %229 = arith.select %227, %225, %228 : vector<1x8xi1>, vector<1x8xf32>
    %cst_86 = arith.constant dense<0xFF800000> : vector<1xf32>
    %230 = vector.multi_reduction <maximumf>, %229, %cst_86 [1] : vector<1x8xf32> to vector<1xf32>
    %231 = vector.shape_cast %230 : vector<1xf32> to vector<1x1xf32>
    %232 = vector.broadcast %231 : vector<1x1xf32> to vector<1x8xf32>
    %233 = arith.subf %229, %232 : vector<1x8xf32>
    %234 = math.exp %233 : vector<1x8xf32>
    %cst_87 = arith.constant dense<0.000000e+00> : vector<1xf32>
    %235 = vector.multi_reduction <add>, %234, %cst_87 [1] : vector<1x8xf32> to vector<1xf32>
    %236 = vector.shape_cast %235 : vector<1xf32> to vector<1x1xf32>
    %237 = vector.broadcast %236 : vector<1x1xf32> to vector<1x8xf32>
    %238 = arith.divf %234, %237 : vector<1x8xf32>
    %cst_88 = arith.constant dense<0.000000e+00> : vector<1x32xf32>
    %239 = tpu.matmul %238, %52, %cst_88 {dimension_numbers = #tpu.dot_dimension_numbers<[1], [0], [0], [1], [0, 0, 1, 1], [], []>} : vector<1x8xf32>, vector<8x32xf32>, vector<1x32xf32> -> vector<1x32xf32>
    %240 = arith.truncf %218 : vector<1x32xf32> to vector<1x32xbf16>
    %cst_89 = arith.constant dense<0.000000e+00> : vector<1x32xf32>
    %241 = tpu.matmul %240, %4, %cst_89 {dimension_numbers = #tpu.dot_dimension_numbers<[1], [0], [0], [1], [0, 0, 1, 1], [], []>} : vector<1x32xbf16>, vector<32x32xbf16>, vector<1x32xf32> -> vector<1x32xf32>
    %242 = arith.truncf %239 : vector<1x32xf32> to vector<1x32xbf16>
    %cst_90 = arith.constant dense<0.000000e+00> : vector<1x32xf32>
    %243 = tpu.matmul %242, %5, %cst_90 {dimension_numbers = #tpu.dot_dimension_numbers<[1], [0], [0], [1], [0, 0, 1, 1], [], []>} : vector<1x32xbf16>, vector<32x32xbf16>, vector<1x32xf32> -> vector<1x32xf32>
    %244 = arith.addf %241, %243 : vector<1x32xf32>
    %245 = arith.addf %244, %6 : vector<1x32xf32>
    %cst_91 = arith.constant 0.000000e+00 : f32
    %246 = vector.broadcast %cst_91 : f32 to vector<1x32xf32>
    %247 = arith.maximumf %245, %246 : vector<1x32xf32>
    %248 = arith.truncf %247 : vector<1x32xf32> to vector<1x32xbf16>
    %cst_92 = arith.constant dense<0.000000e+00> : vector<1x96xf32>
    %249 = tpu.matmul %248, %7, %cst_92 {dimension_numbers = #tpu.dot_dimension_numbers<[1], [0], [0], [1], [0, 0, 1, 1], [], []>} : vector<1x32xbf16>, vector<32x96xbf16>, vector<1x96xf32> -> vector<1x96xf32>
    %250 = arith.addf %249, %9 : vector<1x96xf32>
    %251 = arith.truncf %201 : vector<1x32xf32> to vector<1x32xbf16>
    %cst_93 = arith.constant dense<0.000000e+00> : vector<1x96xf32>
    %252 = tpu.matmul %251, %8, %cst_93 {dimension_numbers = #tpu.dot_dimension_numbers<[1], [0], [0], [1], [0, 0, 1, 1], [], []>} : vector<1x32xbf16>, vector<32x96xbf16>, vector<1x96xf32> -> vector<1x96xf32>
    %253 = arith.addf %252, %10 : vector<1x96xf32>
    %254 = vector.extract_strided_slice %250 {offsets = [0, 0], sizes = [1, 32], strides = [1, 1]} : vector<1x96xf32> to vector<1x32xf32>
    %255 = vector.extract_strided_slice %253 {offsets = [0, 0], sizes = [1, 32], strides = [1, 1]} : vector<1x96xf32> to vector<1x32xf32>
    %256 = arith.addf %254, %255 : vector<1x32xf32>
    %257 = arith.negf %256 : vector<1x32xf32>
    %258 = math.exp %257 : vector<1x32xf32>
    %cst_94 = arith.constant 1.000000e+00 : f32
    %259 = vector.broadcast %cst_94 : f32 to vector<1x32xf32>
    %260 = arith.addf %259, %258 : vector<1x32xf32>
    %261 = arith.divf %259, %260 : vector<1x32xf32>
    %262 = vector.extract_strided_slice %250 {offsets = [0, 32], sizes = [1, 32], strides = [1, 1]} : vector<1x96xf32> to vector<1x32xf32>
    %263 = vector.extract_strided_slice %253 {offsets = [0, 32], sizes = [1, 32], strides = [1, 1]} : vector<1x96xf32> to vector<1x32xf32>
    %264 = arith.addf %262, %263 : vector<1x32xf32>
    %265 = arith.negf %264 : vector<1x32xf32>
    %266 = math.exp %265 : vector<1x32xf32>
    %cst_95 = arith.constant 1.000000e+00 : f32
    %267 = vector.broadcast %cst_95 : f32 to vector<1x32xf32>
    %268 = arith.addf %267, %266 : vector<1x32xf32>
    %269 = arith.divf %267, %268 : vector<1x32xf32>
    %270 = vector.extract_strided_slice %250 {offsets = [0, 64], sizes = [1, 32], strides = [1, 1]} : vector<1x96xf32> to vector<1x32xf32>
    %271 = vector.extract_strided_slice %253 {offsets = [0, 64], sizes = [1, 32], strides = [1, 1]} : vector<1x96xf32> to vector<1x32xf32>
    %272 = arith.mulf %261, %271 : vector<1x32xf32>
    %273 = arith.addf %270, %272 : vector<1x32xf32>
    %274 = math.tanh %273 : vector<1x32xf32>
    %cst_96 = arith.constant 1.000000e+00 : f32
    %275 = vector.broadcast %cst_96 : f32 to vector<1x32xf32>
    %276 = arith.subf %275, %269 : vector<1x32xf32>
    %277 = arith.mulf %276, %274 : vector<1x32xf32>
    %278 = arith.mulf %269, %201 : vector<1x32xf32>
    %279 = arith.addf %277, %278 : vector<1x32xf32>
    %cst_97 = arith.constant dense<0xFF800000> : vector<1xf32>
    %280 = vector.multi_reduction <maximumf>, %279, %cst_97 [1] : vector<1x32xf32> to vector<1xf32>
    %281 = vector.shape_cast %280 : vector<1xf32> to vector<1x1xf32>
    %282 = vector.broadcast %281 : vector<1x1xf32> to vector<1x32xf32>
    %283 = arith.cmpf oeq, %279, %282 : vector<1x32xf32>
    %c32_i32_98 = arith.constant 32 : i32
    %284 = vector.broadcast %c32_i32_98 : i32 to vector<1x32xi32>
    %285 = arith.select %283, %12, %284 : vector<1x32xi1>, vector<1x32xi32>
    %cst_99 = arith.constant dense<2147483647> : vector<1xi32>
    %286 = vector.multi_reduction <minsi>, %285, %cst_99 [1] : vector<1x32xi32> to vector<1xi32>
    %287 = vector.shape_cast %286 : vector<1xi32> to vector<1x1xi32>
    %288 = arith.index_cast %c2_i32_80 : i32 to index
    %c0_100 = arith.constant 0 : index
    %289 = vector.load %arg18[%288, %c0_100] : memref<4x1xi32, #tpu.memory_space<vmem>>, vector<1x1xi32>
    tpu.vector_store %arg18[%288, %c0_100], %287 {strides = array<i32>} : memref<4x1xi32, #tpu.memory_space<vmem>>, vector<1x1xi32>,
    %290 = arith.index_cast %c2_i32_80 : i32 to index
    %c0_101 = arith.constant 0 : index
    %291 = vector.load %arg19[%290, %c0_101] : memref<4x8xf32, #tpu.memory_space<vmem>>, vector<1x8xf32>
    tpu.vector_store %arg19[%290, %c0_101], %238 {strides = array<i32>} : memref<4x8xf32, #tpu.memory_space<vmem>>, vector<1x8xf32>,
    %c3_i32 = arith.constant 3 : i32
    %292 = vector.broadcast %287 : vector<1x1xi32> to vector<1x40xi32>
    %293 = arith.cmpi eq, %11, %292 : vector<1x40xi32>
    %294 = arith.extui %293 : vector<1x40xi1> to vector<1x40xi32>
    %295 = arith.sitofp %294 : vector<1x40xi32> to vector<1x40xf32>
    %cst_102 = arith.constant dense<0.000000e+00> : vector<1x32xf32>
    %296 = tpu.matmul %295, %1, %cst_102 {dimension_numbers = #tpu.dot_dimension_numbers<[1], [0], [0], [1], [0, 0, 1, 1], [], []>} : vector<1x40xf32>, vector<40x32xf32>, vector<1x32xf32> -> vector<1x32xf32>
    %297 = arith.truncf %279 : vector<1x32xf32> to vector<1x32xbf16>
    %cst_103 = arith.constant dense<0.000000e+00> : vector<1x32xf32>
    %298 = tpu.matmul %297, %2, %cst_103 {dimension_numbers = #tpu.dot_dimension_numbers<[1], [0], [0], [1], [0, 0, 1, 1], [], []>} : vector<1x32xbf16>, vector<32x32xbf16>, vector<1x32xf32> -> vector<1x32xf32>
    %299 = vector.broadcast %298 : vector<1x32xf32> to vector<8x32xf32>
    %300 = arith.addf %299, %55 : vector<8x32xf32>
    %301 = math.tanh %300 : vector<8x32xf32>
    %302 = arith.truncf %301 : vector<8x32xf32> to vector<8x32xbf16>
    %cst_104 = arith.constant dense<0.000000e+00> : vector<1x8xf32>
    %303 = tpu.matmul %3, %302, %cst_104 {dimension_numbers = #tpu.dot_dimension_numbers<[1], [1], [0], [0], [0, 0, 1, 0], [], []>} : vector<1x32xbf16>, vector<8x32xbf16>, vector<1x8xf32> -> vector<1x8xf32>
    %c0_i32_105 = arith.constant 0 : i32
    %304 = vector.broadcast %c0_i32_105 : i32 to vector<1x8xi32>
    %305 = arith.cmpi ne, %0, %304 : vector<1x8xi32>
    %cst_106 = arith.constant 0xFF800000 : f32
    %306 = vector.broadcast %cst_106 : f32 to vector<1x8xf32>
    %307 = arith.select %305, %303, %306 : vector<1x8xi1>, vector<1x8xf32>
    %cst_107 = arith.constant dense<0xFF800000> : vector<1xf32>
    %308 = vector.multi_reduction <maximumf>, %307, %cst_107 [1] : vector<1x8xf32> to vector<1xf32>
    %309 = vector.shape_cast %308 : vector<1xf32> to vector<1x1xf32>
    %310 = vector.broadcast %309 : vector<1x1xf32> to vector<1x8xf32>
    %311 = arith.subf %307, %310 : vector<1x8xf32>
    %312 = math.exp %311 : vector<1x8xf32>
    %cst_108 = arith.constant dense<0.000000e+00> : vector<1xf32>
    %313 = vector.multi_reduction <add>, %312, %cst_108 [1] : vector<1x8xf32> to vector<1xf32>
    %314 = vector.shape_cast %313 : vector<1xf32> to vector<1x1xf32>
    %315 = vector.broadcast %314 : vector<1x1xf32> to vector<1x8xf32>
    %316 = arith.divf %312, %315 : vector<1x8xf32>
    %cst_109 = arith.constant dense<0.000000e+00> : vector<1x32xf32>
    %317 = tpu.matmul %316, %52, %cst_109 {dimension_numbers = #tpu.dot_dimension_numbers<[1], [0], [0], [1], [0, 0, 1, 1], [], []>} : vector<1x8xf32>, vector<8x32xf32>, vector<1x32xf32> -> vector<1x32xf32>
    %318 = arith.truncf %296 : vector<1x32xf32> to vector<1x32xbf16>
    %cst_110 = arith.constant dense<0.000000e+00> : vector<1x32xf32>
    %319 = tpu.matmul %318, %4, %cst_110 {dimension_numbers = #tpu.dot_dimension_numbers<[1], [0], [0], [1], [0, 0, 1, 1], [], []>} : vector<1x32xbf16>, vector<32x32xbf16>, vector<1x32xf32> -> vector<1x32xf32>
    %320 = arith.truncf %317 : vector<1x32xf32> to vector<1x32xbf16>
    %cst_111 = arith.constant dense<0.000000e+00> : vector<1x32xf32>
    %321 = tpu.matmul %320, %5, %cst_111 {dimension_numbers = #tpu.dot_dimension_numbers<[1], [0], [0], [1], [0, 0, 1, 1], [], []>} : vector<1x32xbf16>, vector<32x32xbf16>, vector<1x32xf32> -> vector<1x32xf32>
    %322 = arith.addf %319, %321 : vector<1x32xf32>
    %323 = arith.addf %322, %6 : vector<1x32xf32>
    %cst_112 = arith.constant 0.000000e+00 : f32
    %324 = vector.broadcast %cst_112 : f32 to vector<1x32xf32>
    %325 = arith.maximumf %323, %324 : vector<1x32xf32>
    %326 = arith.truncf %325 : vector<1x32xf32> to vector<1x32xbf16>
    %cst_113 = arith.constant dense<0.000000e+00> : vector<1x96xf32>
    %327 = tpu.matmul %326, %7, %cst_113 {dimension_numbers = #tpu.dot_dimension_numbers<[1], [0], [0], [1], [0, 0, 1, 1], [], []>} : vector<1x32xbf16>, vector<32x96xbf16>, vector<1x96xf32> -> vector<1x96xf32>
    %328 = arith.addf %327, %9 : vector<1x96xf32>
    %329 = arith.truncf %279 : vector<1x32xf32> to vector<1x32xbf16>
    %cst_114 = arith.constant dense<0.000000e+00> : vector<1x96xf32>
    %330 = tpu.matmul %329, %8, %cst_114 {dimension_numbers = #tpu.dot_dimension_numbers<[1], [0], [0], [1], [0, 0, 1, 1], [], []>} : vector<1x32xbf16>, vector<32x96xbf16>, vector<1x96xf32> -> vector<1x96xf32>
    %331 = arith.addf %330, %10 : vector<1x96xf32>
    %332 = vector.extract_strided_slice %328 {offsets = [0, 0], sizes = [1, 32], strides = [1, 1]} : vector<1x96xf32> to vector<1x32xf32>
    %333 = vector.extract_strided_slice %331 {offsets = [0, 0], sizes = [1, 32], strides = [1, 1]} : vector<1x96xf32> to vector<1x32xf32>
    %334 = arith.addf %332, %333 : vector<1x32xf32>
    %335 = arith.negf %334 : vector<1x32xf32>
    %336 = math.exp %335 : vector<1x32xf32>
    %cst_115 = arith.constant 1.000000e+00 : f32
    %337 = vector.broadcast %cst_115 : f32 to vector<1x32xf32>
    %338 = arith.addf %337, %336 : vector<1x32xf32>
    %339 = arith.divf %337, %338 : vector<1x32xf32>
    %340 = vector.extract_strided_slice %328 {offsets = [0, 32], sizes = [1, 32], strides = [1, 1]} : vector<1x96xf32> to vector<1x32xf32>
    %341 = vector.extract_strided_slice %331 {offsets = [0, 32], sizes = [1, 32], strides = [1, 1]} : vector<1x96xf32> to vector<1x32xf32>
    %342 = arith.addf %340, %341 : vector<1x32xf32>
    %343 = arith.negf %342 : vector<1x32xf32>
    %344 = math.exp %343 : vector<1x32xf32>
    %cst_116 = arith.constant 1.000000e+00 : f32
    %345 = vector.broadcast %cst_116 : f32 to vector<1x32xf32>
    %346 = arith.addf %345, %344 : vector<1x32xf32>
    %347 = arith.divf %345, %346 : vector<1x32xf32>
    %348 = vector.extract_strided_slice %328 {offsets = [0, 64], sizes = [1, 32], strides = [1, 1]} : vector<1x96xf32> to vector<1x32xf32>
    %349 = vector.extract_strided_slice %331 {offsets = [0, 64], sizes = [1, 32], strides = [1, 1]} : vector<1x96xf32> to vector<1x32xf32>
    %350 = arith.mulf %339, %349 : vector<1x32xf32>
    %351 = arith.addf %348, %350 : vector<1x32xf32>
    %352 = math.tanh %351 : vector<1x32xf32>
    %cst_117 = arith.constant 1.000000e+00 : f32
    %353 = vector.broadcast %cst_117 : f32 to vector<1x32xf32>
    %354 = arith.subf %353, %347 : vector<1x32xf32>
    %355 = arith.mulf %354, %352 : vector<1x32xf32>
    %356 = arith.mulf %347, %279 : vector<1x32xf32>
    %357 = arith.addf %355, %356 : vector<1x32xf32>
    %cst_118 = arith.constant dense<0xFF800000> : vector<1xf32>
    %358 = vector.multi_reduction <maximumf>, %357, %cst_118 [1] : vector<1x32xf32> to vector<1xf32>
    %359 = vector.shape_cast %358 : vector<1xf32> to vector<1x1xf32>
    %360 = vector.broadcast %359 : vector<1x1xf32> to vector<1x32xf32>
    %361 = arith.cmpf oeq, %357, %360 : vector<1x32xf32>
    %c32_i32_119 = arith.constant 32 : i32
    %362 = vector.broadcast %c32_i32_119 : i32 to vector<1x32xi32>
    %363 = arith.select %361, %12, %362 : vector<1x32xi1>, vector<1x32xi32>
    %cst_120 = arith.constant dense<2147483647> : vector<1xi32>
    %364 = vector.multi_reduction <minsi>, %363, %cst_120 [1] : vector<1x32xi32> to vector<1xi32>
    %365 = vector.shape_cast %364 : vector<1xi32> to vector<1x1xi32>
    %366 = arith.index_cast %c3_i32 : i32 to index
    %c0_121 = arith.constant 0 : index
    %367 = vector.load %arg18[%366, %c0_121] : memref<4x1xi32, #tpu.memory_space<vmem>>, vector<1x1xi32>
    tpu.vector_store %arg18[%366, %c0_121], %365 {strides = array<i32>} : memref<4x1xi32, #tpu.memory_space<vmem>>, vector<1x1xi32>,
    %368 = arith.index_cast %c3_i32 : i32 to index
    %c0_122 = arith.constant 0 : index
    %369 = vector.load %arg19[%368, %c0_122] : memref<4x8xf32, #tpu.memory_space<vmem>>, vector<1x8xf32>
    tpu.vector_store %arg19[%368, %c0_122], %316 {strides = array<i32>} : memref<4x8xf32, #tpu.memory_space<vmem>>, vector<1x8xf32>,
    %c4_i32 = arith.constant 4 : i32
    return
  }
  func.func @transform_0(%arg0: i32) -> (i32, i32) {
    %c0_i32 = arith.constant 0 : i32
    %c0_i32_0 = arith.constant 0 : i32
    %c0_i32_1 = arith.constant 0 : i32
    return %c0_i32, %c0_i32_0 : i32, i32
  }
  func.func @transform_1(%arg0: i32) -> (i32, i32) {
    %c0_i32 = arith.constant 0 : i32
    %c0_i32_0 = arith.constant 0 : i32
    %c0_i32_1 = arith.constant 0 : i32
    return %c0_i32, %c0_i32_0 : i32, i32
  }
  func.func @transform_2(%arg0: i32) -> (i32, i32) {
    %c0_i32 = arith.constant 0 : i32
    %c0_i32_0 = arith.constant 0 : i32
    %c0_i32_1 = arith.constant 0 : i32
    return %c0_i32, %c0_i32_0 : i32, i32
  }
  func.func @transform_3(%arg0: i32) -> (i32, i32) {
    %c0_i32 = arith.constant 0 : i32
    %c0_i32_0 = arith.constant 0 : i32
    %c0_i32_1 = arith.constant 0 : i32
    return %c0_i32, %c0_i32_0 : i32, i32
  }
  func.func @transform_4(%arg0: i32) -> (i32, i32) {
    %c0_i32 = arith.constant 0 : i32
    %c0_i32_0 = arith.constant 0 : i32
    %c0_i32_1 = arith.constant 0 : i32
    return %c0_i32, %c0_i32_0 : i32, i32
  }
  func.func @transform_5(%arg0: i32) -> (i32, i32) {
    %c0_i32 = arith.constant 0 : i32
    %c0_i32_0 = arith.constant 0 : i32
    %c0_i32_1 = arith.constant 0 : i32
    return %c0_i32, %c0_i32_0 : i32, i32
  }
  func.func @transform_6(%arg0: i32) -> (i32, i32) {
    %c0_i32 = arith.constant 0 : i32
    %c0_i32_0 = arith.constant 0 : i32
    %c0_i32_1 = arith.constant 0 : i32
    return %c0_i32, %c0_i32_0 : i32, i32
  }
  func.func @transform_7(%arg0: i32) -> (i32, i32) {
    %c0_i32 = arith.constant 0 : i32
    %c0_i32_0 = arith.constant 0 : i32
    %c0_i32_1 = arith.constant 0 : i32
    return %c0_i32, %c0_i32_0 : i32, i32
  }
  func.func @transform_8(%arg0: i32) -> (i32, i32) {
    %c0_i32 = arith.constant 0 : i32
    %c0_i32_0 = arith.constant 0 : i32
    %c0_i32_1 = arith.constant 0 : i32
    return %c0_i32, %c0_i32_0 : i32, i32
  }
  func.func @transform_9(%arg0: i32) -> (i32, i32) {
    %c0_i32 = arith.constant 0 : i32
    %c0_i32_0 = arith.constant 0 : i32
    %c0_i32_1 = arith.constant 0 : i32
    return %c0_i32, %c0_i32_0 : i32, i32
  }
  func.func @transform_10(%arg0: i32) -> (i32, i32) {
    %c0_i32 = arith.constant 0 : i32
    %c0_i32_0 = arith.constant 0 : i32
    %c0_i32_1 = arith.constant 0 : i32
    return %c0_i32, %c0_i32_0 : i32, i32
  }
  func.func @transform_11(%arg0: i32) -> (i32, i32) {
    %c0_i32 = arith.constant 0 : i32
    %c0_i32_0 = arith.constant 0 : i32
    %c0_i32_1 = arith.constant 0 : i32
    return %c0_i32, %c0_i32_0 : i32, i32
  }
  func.func @transform_12(%arg0: i32) -> (i32, i32) {
    %c0_i32 = arith.constant 0 : i32
    %c0_i32_0 = arith.constant 0 : i32
    %c0_i32_1 = arith.constant 0 : i32
    return %c0_i32, %c0_i32_0 : i32, i32
  }
  func.func @transform_13(%arg0: i32) -> (i32, i32) {
    %c0_i32 = arith.constant 0 : i32
    %c0_i32_0 = arith.constant 0 : i32
    %c0_i32_1 = arith.constant 0 : i32
    return %c0_i32, %c0_i32_0 : i32, i32
  }
  func.func @transform_14(%arg0: i32) -> (i32, i32) {
    %c0_i32 = arith.constant 0 : i32
    %c0_i32_0 = arith.constant 0 : i32
    %c0_i32_1 = arith.constant 0 : i32
    return %c0_i32, %c0_i32_0 : i32, i32
  }
  func.func @transform_15(%arg0: i32) -> (i32, i32) {
    %c0_i32 = arith.constant 0 : i32
    %c0_i32_0 = arith.constant 0 : i32
    %c0_i32_1 = arith.constant 0 : i32
    return %c0_i32, %c0_i32_0 : i32, i32
  }
  func.func @transform_16(%arg0: i32) -> (i32, i32) {
    %c0_i32 = arith.constant 0 : i32
    %c0_i32_0 = arith.constant 0 : i32
    %c0_i32_1 = arith.constant 0 : i32
    return %c0_i32, %c0_i32_0 : i32, i32
  }
  func.func @transform_17(%arg0: i32) -> (i32, i32) {
    %c0_i32 = arith.constant 0 : i32
    %c0_i32_0 = arith.constant 0 : i32
    %c0_i32_1 = arith.constant 0 : i32
    return %c0_i32, %c0_i32_0 : i32, i32
  }
  func.func @transform_18(%arg0: i32) -> (i32, i32) {
    %c0_i32 = arith.constant 0 : i32
    %c0_i32_0 = arith.constant 0 : i32
    %c0_i32_1 = arith.constant 0 : i32
    return %c0_i32, %c0_i32_0 : i32, i32
  }
}

</mosaic_0001>

<llo_original>
// kernel: run_seq2seq.1
$region0: #{run_seq2seq.1}
  #allocation0 [shape = 'u32[]', space=smem, size = 0x4, offset = 0x4, fixed_abs, tag = 'smem constant byte address 0x4 - core index']
  #allocation1 [shape = 'u32[72,128]{1,0:T(1,128)}', space=vmem, size = 0x9000, scoped, tag = 'internal scratch']
  %s0 = inlined_call_operand.vmem [shape: f32[8,32], index: 0, kind: input, shape index: {}]
  %s1 = inlined_call_operand.vmem [shape: s32[1,8], index: 1, kind: input, shape index: {}]
  %s2 = inlined_call_operand.vmem [shape: f32[40,32], index: 2, kind: input, shape index: {}]
  %s3 = inlined_call_operand.vmem [shape: bf16[32,96], index: 3, kind: input, shape index: {}]
  %s4 = inlined_call_operand.vmem [shape: bf16[32,96], index: 4, kind: input, shape index: {}]
  %s5 = inlined_call_operand.vmem [shape: f32[1,96], index: 5, kind: input, shape index: {}]
  %s6 = inlined_call_operand.vmem [shape: f32[1,96], index: 6, kind: input, shape index: {}]
  %s7 = inlined_call_operand.vmem [shape: bf16[32,32], index: 7, kind: input, shape index: {}]
  %s8 = inlined_call_operand.vmem [shape: bf16[32,32], index: 8, kind: input, shape index: {}]
  %s9 = inlined_call_operand.vmem [shape: bf16[1,32], index: 9, kind: input, shape index: {}]
  %s10 = inlined_call_operand.hbm [shape: bf16[32,32], index: 10, kind: input, shape index: {}]
  %s11 = inlined_call_operand.hbm [shape: bf16[32,32], index: 11, kind: input, shape index: {}]
  %s12 = inlined_call_operand.hbm [shape: f32[1,32], index: 12, kind: input, shape index: {}]
  %s13 = inlined_call_operand.hbm [shape: bf16[32,96], index: 13, kind: input, shape index: {}]
  %s14 = inlined_call_operand.hbm [shape: bf16[32,96], index: 14, kind: input, shape index: {}]
  %s15 = inlined_call_operand.hbm [shape: f32[1,96], index: 15, kind: input, shape index: {}]
  %s16 = inlined_call_operand.hbm [shape: f32[1,96], index: 16, kind: input, shape index: {}]
  %s17 = inlined_call_operand.vmem [shape: s32[4,1], index: 17, kind: output, shape index: {0}]
  %s18 = inlined_call_operand.hbm [shape: f32[4,8], index: 18, kind: output, shape index: {1}]
  %19 = xla_tuple %s17, %s18
  %s20 = sld [smem:[#allocation0]]
  $region114: #{run_seq2seq.1} parent=0
    _
  %s22 = ssub.s32 1, %s20
  %s23 = scalar_select 0, %s22, %s20
  $region1: #{run_seq2seq.1} parent=0
    #allocation2 [shape = 'u8[8192]{0}', space=vmem, size = 0x2000, scoped, tag = 'input window, operand 10, single buffered']
    #allocation3 [shape = 's32[1]{0}', space=sflag, size = 0x4, scoped, tag = 'scoped memory for run_seq2seq.1']
    #allocation4 [shape = 's32[1]{0}', space=sflag, size = 0x4, scoped, tag = 'scoped memory for run_seq2seq.1']
    #allocation5 [shape = 'u8[8192]{0}', space=vmem, size = 0x2000, scoped, tag = 'input window, operand 11, single buffered']
    #allocation6 [shape = 's32[1]{0}', space=sflag, size = 0x4, scoped, tag = 'scoped memory for run_seq2seq.1']
    #allocation7 [shape = 'u8[512]{0}', space=vmem, size = 0x400, scoped, tag = 'input window, operand 12, single buffered']
    #allocation8 [shape = 'u8[8192]{0}', space=vmem, size = 0x2000, scoped, tag = 'input window, operand 13, single buffered']
    #allocation9 [shape = 's32[1]{0}', space=sflag, size = 0x4, scoped, tag = 'scoped memory for run_seq2seq.1']
    #allocation10 [shape = 'u8[8192]{0}', space=vmem, size = 0x2000, scoped, tag = 'input window, operand 14, single buffered']
    #allocation11 [shape = 'u8[512]{0}', space=vmem, size = 0x400, scoped, tag = 'input window, operand 15, single buffered']
    #allocation12 [shape = 's32[1]{0}', space=sflag, size = 0x4, scoped, tag = 'scoped memory for run_seq2seq.1']
    #allocation13 [shape = 'u8[512]{0}', space=vmem, size = 0x400, scoped, tag = 'input window, operand 16, single buffered']
    #allocation14 [shape = 'u8[2048]{0}', space=vmem, size = 0x800, scoped, tag = 'output window, operand 1, single buffered']
    %24 = vsyncpa [#allocation3], 0
    %25 = vsyncpa [#allocation6], 0
    %26 = vsyncpa [#allocation9], 0
    %27 = vsyncpa [#allocation12], 0
    %28 = vsyncpa [#allocation4], 0
    // Predicated region
    $region2: #{run_seq2seq.1} parent=1 // pred_check
      _
    $region3: #{run_seq2seq.1} parent=1 // pred_check_branch
      %30 = sbr.rel (0) target = $region5
    $region4: #{run_seq2seq.1} parent=1 // pred_region
      _
    $region5: #{run_seq2seq.1} parent=1 // pred_fallthru
      _
    // Predicated region
    $region6: #{run_seq2seq.1} parent=1 // pred_check
      _
    $region7: #{run_seq2seq.1} parent=1 // pred_check_branch
      %32 = sbr.rel (0) target = $region9
    $region8: #{run_seq2seq.1} parent=1 // pred_region
      _
    $region9: #{run_seq2seq.1} parent=1 // pred_fallthru
      _
    // Predicated region
    $region10: #{run_seq2seq.1} parent=1 // pred_check
      _
    $region11: #{run_seq2seq.1} parent=1 // pred_check_branch
      %34 = sbr.rel (0) target = $region13
    $region12: #{run_seq2seq.1} parent=1 // pred_region
      _
    $region13: #{run_seq2seq.1} parent=1 // pred_fallthru
      _
    // Predicated region
    $region14: #{run_seq2seq.1} parent=1 // pred_check
      _
    $region15: #{run_seq2seq.1} parent=1 // pred_check_branch
      %36 = sbr.rel (0) target = $region17
    $region16: #{run_seq2seq.1} parent=1 // pred_region
      _
    $region17: #{run_seq2seq.1} parent=1 // pred_fallthru
      _
    // Predicated region
    $region18: #{run_seq2seq.1} parent=1 // pred_check
      _
    $region19: #{run_seq2seq.1} parent=1 // pred_check_branch
      %38 = sbr.rel (0) target = $region21
    $region20: #{run_seq2seq.1} parent=1 // pred_region
      _
    $region21: #{run_seq2seq.1} parent=1 // pred_fallthru
      _
    // Predicated region
    $region22: #{run_seq2seq.1} parent=1 // pred_check
      _
    $region23: #{run_seq2seq.1} parent=1 // pred_check_branch
      %40 = sbr.rel (0) target = $region25
    $region24: #{run_seq2seq.1} parent=1 // pred_region
      _
    $region25: #{run_seq2seq.1} parent=1 // pred_fallthru
      _
    // Predicated region
    $region26: #{run_seq2seq.1} parent=1 // pred_check
      _
    $region27: #{run_seq2seq.1} parent=1 // pred_check_branch
      %42 = sbr.rel (0) target = $region29
    $region28: #{run_seq2seq.1} parent=1 // pred_region
      _
    $region29: #{run_seq2seq.1} parent=1 // pred_fallthru
      _
    // Predicated region
    $region30: #{run_seq2seq.1} parent=1 // pred_check
      _
    $region31: #{run_seq2seq.1} parent=1 // pred_check_branch
      %44 = sbr.rel (0) target = $region33
    $region32: #{run_seq2seq.1} parent=1 // pred_region
      _
    $region33: #{run_seq2seq.1} parent=1 // pred_fallthru
      _
    // Predicated region
    $region34: #{run_seq2seq.1} parent=1 // pred_check
      _
    $region35: #{run_seq2seq.1} parent=1 // pred_check_branch
      %46 = sbr.rel (0) target = $region37
    $region36: #{run_seq2seq.1} parent=1 // pred_region
      _
    $region37: #{run_seq2seq.1} parent=1 // pred_fallthru
      _
    // Predicated region
    $region38: #{run_seq2seq.1} parent=1 // pred_check
      _
    $region39: #{run_seq2seq.1} parent=1 // pred_check_branch
      %48 = sbr.rel (0) target = $region41
    $region40: #{run_seq2seq.1} parent=1 // pred_region
      _
    $region41: #{run_seq2seq.1} parent=1 // pred_fallthru
      _
    // Predicated region
    $region42: #{run_seq2seq.1} parent=1 // pred_check
      _
    $region43: #{run_seq2seq.1} parent=1 // pred_check_branch
      %50 = sbr.rel (0) target = $region45
    $region44: #{run_seq2seq.1} parent=1 // pred_region
      %52 = vsyncadd [#allocation3], 0
      %s53 = sshll.u32 %s10, 4
      %s54 = int_to_ptr.hbm [resolvable:$true] %s53
      %s55 = sshll.u32 [#allocation2], 4
      %s56 = int_to_ptr.vmem [resolvable:$true] %s55
      %61 = dma.hbm_to_vmem [thread:$0]  %s54, 256, %s56, [#allocation3], 64, 64, 4
    $region45: #{run_seq2seq.1} parent=1 // pred_fallthru
      _
    // Predicated region
    $region46: #{run_seq2seq.1} parent=1 // pred_check
      _
    $region47: #{run_seq2seq.1} parent=1 // pred_check_branch
      %63 = sbr.rel (0) target = $region49
    $region48: #{run_seq2seq.1} parent=1 // pred_region
      %65 = vsyncadd [#allocation6], 0
      %s66 = sshll.u32 %s11, 4
      %s67 = int_to_ptr.hbm [resolvable:$true] %s66
      %s68 = sshll.u32 [#allocation5], 4
      %s69 = int_to_ptr.vmem [resolvable:$true] %s68
      %74 = dma.hbm_to_vmem [thread:$0]  %s67, 256, %s69, [#allocation6], 64, 64, 4
    $region49: #{run_seq2seq.1} parent=1 // pred_fallthru
      _
    // Predicated region
    $region50: #{run_seq2seq.1} parent=1 // pred_check
      _
    $region51: #{run_seq2seq.1} parent=1 // pred_check_branch
      %76 = sbr.rel (0) target = $region53
    $region52: #{run_seq2seq.1} parent=1 // pred_region
      %78 = vsyncadd [#allocation6], 0
      %s80 = sshll.u32 %s12, 4
      %s81 = int_to_ptr.hbm [resolvable:$true] %s80
      %s82 = sshll.u32 [#allocation7], 4
      %s83 = int_to_ptr.vmem [resolvable:$true] %s82
      %85 = dma.hbm_to_vmem [thread:$0]  %s81, 16, %s83, [#allocation6]
    $region53: #{run_seq2seq.1} parent=1 // pred_fallthru
      _
    // Predicated region
    $region54: #{run_seq2seq.1} parent=1 // pred_check
      _
    $region55: #{run_seq2seq.1} parent=1 // pred_check_branch
      %87 = sbr.rel (0) target = $region57
    $region56: #{run_seq2seq.1} parent=1 // pred_region
      %89 = vsyncadd [#allocation9], 0
      %s90 = sshll.u32 %s13, 4
      %s91 = int_to_ptr.hbm [resolvable:$true] %s90
      %s92 = sshll.u32 [#allocation8], 4
      %s93 = int_to_ptr.vmem [resolvable:$true] %s92
      %98 = dma.hbm_to_vmem [thread:$0]  %s91, 256, %s93, [#allocation9], 64, 64, 4
    $region57: #{run_seq2seq.1} parent=1 // pred_fallthru
      _
    // Predicated region
    $region58: #{run_seq2seq.1} parent=1 // pred_check
      _
    $region59: #{run_seq2seq.1} parent=1 // pred_check_branch
      %100 = sbr.rel (0) target = $region61
    $region60: #{run_seq2seq.1} parent=1 // pred_region
      %102 = vsyncadd [#allocation9], 0
      %s103 = sshll.u32 %s14, 4
      %s104 = int_to_ptr.hbm [resolvable:$true] %s103
      %s105 = sshll.u32 [#allocation10], 4
      %s106 = int_to_ptr.vmem [resolvable:$true] %s105
      %111 = dma.hbm_to_vmem [thread:$0]  %s104, 256, %s106, [#allocation9], 64, 64, 4
    $region61: #{run_seq2seq.1} parent=1 // pred_fallthru
      _
    // Predicated region
    $region62: #{run_seq2seq.1} parent=1 // pred_check
      _
    $region63: #{run_seq2seq.1} parent=1 // pred_check_branch
      %113 = sbr.rel (0) target = $region65
    $region64: #{run_seq2seq.1} parent=1 // pred_region
      %115 = vsyncadd [#allocation12], 0
      %s117 = sshll.u32 %s15, 4
      %s118 = int_to_ptr.hbm [resolvable:$true] %s117
      %s119 = sshll.u32 [#allocation11], 4
      %s120 = int_to_ptr.vmem [resolvable:$true] %s119
      %122 = dma.hbm_to_vmem [thread:$0]  %s118, 16, %s120, [#allocation12]
    $region65: #{run_seq2seq.1} parent=1 // pred_fallthru
      _
    // Predicated region
    $region66: #{run_seq2seq.1} parent=1 // pred_check
      _
    $region67: #{run_seq2seq.1} parent=1 // pred_check_branch
      %124 = sbr.rel (0) target = $region69
    $region68: #{run_seq2seq.1} parent=1 // pred_region
      %126 = vsyncadd [#allocation12], 0
      %s128 = sshll.u32 %s16, 4
      %s129 = int_to_ptr.hbm [resolvable:$true] %s128
      %s130 = sshll.u32 [#allocation13], 4
      %s131 = int_to_ptr.vmem [resolvable:$true] %s130
      %133 = dma.hbm_to_vmem [thread:$0]  %s129, 16, %s131, [#allocation12]
    $region69: #{run_seq2seq.1} parent=1 // pred_fallthru
      _
    // Predicated region
    $region70: #{run_seq2seq.1} parent=1 // pred_check
      _
    $region71: #{run_seq2seq.1} parent=1 // pred_check_branch
      %135 = sbr.rel (0) target = $region73
    $region72: #{run_seq2seq.1} parent=1 // pred_region
      %137 = dma.done [#allocation3], 256
    $region73: #{run_seq2seq.1} parent=1 // pred_fallthru
      _
    // Predicated region
    $region74: #{run_seq2seq.1} parent=1 // pred_check
      _
    $region75: #{run_seq2seq.1} parent=1 // pred_check_branch
      %139 = sbr.rel (0) target = $region77
    $region76: #{run_seq2seq.1} parent=1 // pred_region
      %141 = dma.done [#allocation6], 256
    $region77: #{run_seq2seq.1} parent=1 // pred_fallthru
      _
    // Predicated region
    $region78: #{run_seq2seq.1} parent=1 // pred_check
      _
    $region79: #{run_seq2seq.1} parent=1 // pred_check_branch
      %143 = sbr.rel (0) target = $region81
    $region80: #{run_seq2seq.1} parent=1 // pred_region
      %145 = dma.done [#allocation6], 16
    $region81: #{run_seq2seq.1} parent=1 // pred_fallthru
      _
    // Predicated region
    $region82: #{run_seq2seq.1} parent=1 // pred_check
      _
    $region83: #{run_seq2seq.1} parent=1 // pred_check_branch
      %147 = sbr.rel (0) target = $region85
    $region84: #{run_seq2seq.1} parent=1 // pred_region
      %149 = dma.done [#allocation9], 256
    $region85: #{run_seq2seq.1} parent=1 // pred_fallthru
      _
    // Predicated region
    $region86: #{run_seq2seq.1} parent=1 // pred_check
      _
    $region87: #{run_seq2seq.1} parent=1 // pred_check_branch
      %151 = sbr.rel (0) target = $region89
    $region88: #{run_seq2seq.1} parent=1 // pred_region
      %153 = dma.done [#allocation9], 256
    $region89: #{run_seq2seq.1} parent=1 // pred_fallthru
      _
    // Predicated region
    $region90: #{run_seq2seq.1} parent=1 // pred_check
      _
    $region91: #{run_seq2seq.1} parent=1 // pred_check_branch
      %155 = sbr.rel (0) target = $region93
    $region92: #{run_seq2seq.1} parent=1 // pred_region
      %157 = dma.done [#allocation12], 16
    $region93: #{run_seq2seq.1} parent=1 // pred_fallthru
      _
    // Predicated region
    $region94: #{run_seq2seq.1} parent=1 // pred_check
      _
    $region95: #{run_seq2seq.1} parent=1 // pred_check_branch
      %159 = sbr.rel (0) target = $region97
    $region96: #{run_seq2seq.1} parent=1 // pred_region
      %161 = dma.done [#allocation12], 16
    $region97: #{run_seq2seq.1} parent=1 // pred_fallthru
      _
    %v163 = vld [vmem:[%s1] sm:$0x1]
    %v164 = vld [vmem:[%s2] sm:$0xff]
    %v165 = vld [vmem:[%s2 + $0x8] sm:$0xff]
    %v166 = vld [vmem:[%s2 + $0x10] sm:$0xff]
    %v167 = vld [vmem:[%s2 + $0x18] sm:$0xff]
    %v168 = vld [vmem:[%s2 + $0x20] sm:$0xff]
    %v169 = vld [vmem:[%s8] sm:$0xf]
    %v170 = vld [vmem:[%s8 + $0x4] sm:$0xf]
    %v171 = vld [vmem:[%s8 + $0x8] sm:$0xf]
    %v172 = vld [vmem:[%s8 + $0xc] sm:$0xf]
    %v173 = vld [vmem:[%s9] sm:$0x1]
    %v174 = vld [vmem:[#allocation2] sm:$0xf]
    %v175 = vld [vmem:[#allocation2 + $0x4] sm:$0xf]
    %v176 = vld [vmem:[#allocation2 + $0x8] sm:$0xf]
    %v177 = vld [vmem:[#allocation2 + $0xc] sm:$0xf]
    %v178 = vld [vmem:[#allocation5] sm:$0xf]
    %v179 = vld [vmem:[#allocation5 + $0x4] sm:$0xf]
    %v180 = vld [vmem:[#allocation5 + $0x8] sm:$0xf]
    %v181 = vld [vmem:[#allocation5 + $0xc] sm:$0xf]
    %v182 = vld [vmem:[#allocation7] sm:$0x1]
    %v183 = vld [vmem:[#allocation8] sm:$0xf]
    %v184 = vld [vmem:[#allocation8 + $0x4] sm:$0xf]
    %v185 = vld [vmem:[#allocation8 + $0x8] sm:$0xf]
    %v186 = vld [vmem:[#allocation8 + $0xc] sm:$0xf]
    %v187 = vld [vmem:[#allocation10] sm:$0xf]
    %v188 = vld [vmem:[#allocation10 + $0x4] sm:$0xf]
    %v189 = vld [vmem:[#allocation10 + $0x8] sm:$0xf]
    %v190 = vld [vmem:[#allocation10 + $0xc] sm:$0xf]
    %v191 = vld [vmem:[#allocation11] sm:$0x1]
    %v192 = vld [vmem:[#allocation13] sm:$0x1]
    %v193 = vlaneseq
    %v194 = vand.u32 %v193, 127
    %v195 = vld [vmem:[%s0] sm:$0xff]
    %v196 = vld [vmem:[%s3] sm:$0xf]
    %v197 = vld [vmem:[%s3 + $0x4] sm:$0xf]
    %v198 = vld [vmem:[%s3 + $0x8] sm:$0xf]
    %v199 = vld [vmem:[%s3 + $0xc] sm:$0xf]
    %v200 = vld [vmem:[%s4] sm:$0xf]
    %v201 = vld [vmem:[%s4 + $0x4] sm:$0xf]
    %v202 = vld [vmem:[%s4 + $0x8] sm:$0xf]
    %v203 = vld [vmem:[%s4 + $0xc] sm:$0xf]
    %v204 = vld [vmem:[%s5] sm:$0x1]
    %v205 = vld [vmem:[%s6] sm:$0x1]
    %v206 = vpack.c.bf16 %v195, %v195
    %v208 = vperm.slane %v204, 0
    %v214 = vunpack.c.l.b16 %v196
    %v215 = vunpack.c.l.b16 %v197
    %v216 = vunpack.c.l.b16 %v198
    %v217 = vunpack.c.l.b16 %v199
    %v218 = vpack.c.b16 %v215, %v214
    %v219 = vpack.c.b16 %v217, %v216
    %vm222 = vcmask 261120
    %v224 = vsel %vm222, %v206, 0
    %226 = vmatpush.bf16.msra.mxu0 0
    %227 = vmatpush.bf16.msra.mxu0 0
    %228 = vmatpush.bf16.msra.mxu0 0
    %229 = vmatpush.bf16.msra.mxu0 0
    %230 = vmatpush.bf16.msra.mxu0 0
    %231 = vmatpush.bf16.msra.mxu0 0
    %232 = vmatpush.bf16.msra.mxu0 %v219
    %233 = vmatpush.bf16.msra.mxu0 %v218
    %234 = vmatmul.bf16.gmra.mxu0 %v224
    %v235 = vpop.f32.mrf.mxu0
    %v236 = vadd.f32 %v208, %v235
    %v237 = vpop.f32.mrf.mxu0
    %238 = vdwg.mxu0
    %v240 = vperm.slane %v205, 0
    %v246 = vunpack.c.l.b16 %v200
    %v247 = vunpack.c.l.b16 %v201
    %v248 = vunpack.c.l.b16 %v202
    %v249 = vunpack.c.l.b16 %v203
    %v250 = vpack.c.b16 %v247, %v246
    %v251 = vpack.c.b16 %v249, %v248
    %v255 = vsel %vm222, 0, 0
    %257 = vmatpush.bf16.msra.mxu0 0
    %258 = vmatpush.bf16.msra.mxu0 0
    %259 = vmatpush.bf16.msra.mxu0 0
    %260 = vmatpush.bf16.msra.mxu0 0
    %261 = vmatpush.bf16.msra.mxu0 0
    %262 = vmatpush.bf16.msra.mxu0 0
    %263 = vmatpush.bf16.msra.mxu0 %v251
    %264 = vmatpush.bf16.msra.mxu0 %v250
    %265 = vmatmul.bf16.gmra.mxu0 %v255
    %v266 = vpop.f32.mrf.mxu0
    %v267 = vadd.f32 %v240, %v266
    %v268 = vpop.f32.mrf.mxu0
    %269 = vdwg.mxu0
    %v270 = vadd.f32 %v236, %v267
    %v271 = vxor.u32 %v270, 2147483648
    %v272 = vmul.f32 %v271, 1.442695
    %v273 = vpow.pop %v272
    %v274 = vadd.f32 %v273, 1.0
    %v275 = vrcp.pop %v274
    %v276 = vmul.f32 %v274, %v275
    %v277 = vsub.f32 1.0, %v276
    %v278 = vmul.f32 %v275, %v277
    %v279 = vadd.f32 %v275, %v278
    %vm280 = vweird.f32 %v274
    %vm281 = vweird.f32 %v275
    %vm282 = vmor %vm280, %vm281
    %v283 = vsel %vm282, %v275, %v279
    %v284 = vand.u32 2147483647, %v274
    %vm285 = vcmp.eq.f32.partialorder %v284, 8.507059e+37
    %v286 = vand.u32 %v274, 2147483648
    %v287 = vor.u32 1.1754944e-38, %v286
    %v288 = vsel %vm285, %v287, %v283
    %v289 = vmul.f32 1.0, %v288
    %291 = vrot.lane.b32.xlu0 %v267, 64
    %v292 = vpop.permute.xlu0 %291
    %v294 = vmul.f32 %v289, %v292
    %296 = vrot.lane.b32.xlu0 %v294, 64
    %v297 = vpop.permute.xlu0 %296
    %v299 = vadd.f32 %v236, %v297
    %v300 = vtanh.pop %v299
    %v301 = vsub.f32 1.0, %v289
    %303 = vrot.lane.b32.xlu0 %v300, 96
    %v304 = vpop.permute.xlu0 %303
    %v306 = vmul.f32 %v301, %v304
    %v307 = vmul.f32 %v289, 0.0
    %v308 = vadd.f32 %v306, %v307
    %v309 = vld [vmem:[%s7] sm:$0xf]
    %v310 = vld [vmem:[%s7 + $0x4] sm:$0xf]
    %v311 = vld [vmem:[%s7 + $0x8] sm:$0xf]
    %v312 = vld [vmem:[%s7 + $0xc] sm:$0xf]
    %v313 = vpack.c.bf16 %v308, %v308
    %315 = vrot.lane.b32.xlu0 %v313, 96
    %v316 = vpop.permute.xlu0 %315
    %v321 = vunpack.c.l.b16 %v309
    %v322 = vunpack.c.l.b16 %v310
    %v323 = vunpack.c.l.b16 %v311
    %v324 = vunpack.c.l.b16 %v312
    %v325 = vpack.c.b16 %v322, %v321
    %v326 = vpack.c.b16 %v324, %v323
    %v330 = vsel %vm222, %v316, 0
    %332 = vmatpush.bf16.msra.mxu0 0
    %333 = vmatpush.bf16.msra.mxu0 0
    %334 = vmatpush.bf16.msra.mxu0 0
    %335 = vmatpush.bf16.msra.mxu0 0
    %336 = vmatpush.bf16.msra.mxu0 0
    %337 = vmatpush.bf16.msra.mxu0 0
    %338 = vmatpush.bf16.msra.mxu0 %v326
    %339 = vmatpush.bf16.msra.mxu0 %v325
    %340 = vmatmul.bf16.gmra.mxu0 %v330
    %v341 = vpop.f32.mrf.mxu0
    %v342 = vadd.f32 0.0, %v341
    %v343 = vpop.f32.mrf.mxu0
    %344 = vdwg.mxu0
    %vm345 = vcmp.eq.s32.totalorder %v194, 2
    %v346 = vsel %vm345, 1, 0
    %v347 = vcvt.s32.f32 %v346
    %vm348 = vcmask 326656
    %v350 = vsel %vm348, %v347, 0
    %352 = vmatpush.msra.mxu0 0.0
    %353 = vmatpush.msra.mxu0 0.0
    %354 = vmatpush.msra.mxu0 0.0
    %355 = vmatpush.msra.mxu0 0.0
    %356 = vmatpush.msra.mxu0 0.0
    %357 = vmatpush.msra.mxu0 0.0
    %358 = vmatpush.msra.mxu0 0.0
    %359 = vmatpush.msra.mxu0 0.0
    %360 = vmatpush.msra.mxu0 0.0
    %361 = vmatpush.msra.mxu0 0.0
    %362 = vmatpush.msra.mxu0 0.0
    %363 = vmatpush.msra.mxu0 %v168
    %364 = vmatpush.msra.mxu0 %v167
    %365 = vmatpush.msra.mxu0 %v166
    %366 = vmatpush.msra.mxu0 %v165
    %367 = vmatpush.msra.mxu0 %v164
    %368 = vmatmul.f32.gmra.mxu0 %v350
    %v369 = vpop.f32.mrf.mxu0
    %v370 = vadd.f32 0.0, %v369
    %371 = vdwg.mxu0
    %v373 = vshrl.u32 %v313, 16
    %v375 = vrot.slane %v373, 3
    %376 = vrot.lane.b32.xlu0 %v375, 96
    %v377 = vpop.permute.xlu0 %376
    %v382 = vunpack.c.l.b16 %v169
    %v383 = vunpack.c.l.b16 %v170
    %v384 = vunpack.c.l.b16 %v171
    %v385 = vunpack.c.l.b16 %v172
    %v386 = vpack.c.b16 %v383, %v382
    %v387 = vpack.c.b16 %v385, %v384
    %v391 = vsel %vm222, %v377, 0
    %393 = vmatpush.bf16.msra.mxu0 0
    %394 = vmatpush.bf16.msra.mxu0 0
    %395 = vmatpush.bf16.msra.mxu0 0
    %396 = vmatpush.bf16.msra.mxu0 0
    %397 = vmatpush.bf16.msra.mxu0 0
    %398 = vmatpush.bf16.msra.mxu0 0
    %399 = vmatpush.bf16.msra.mxu0 %v387
    %400 = vmatpush.bf16.msra.mxu0 %v386
    %401 = vmatmul.bf16.gmra.mxu0 %v391
    %v402 = vpop.f32.mrf.mxu0
    %v403 = vadd.f32 0.0, %v402
    %v404 = vpop.f32.mrf.mxu0
    %405 = vdwg.mxu0
    %v406 = vperm.slane %v403, 0
    %v407 = vadd.f32 %v406, %v342
    %v408 = vtanh.pop %v407
    %v409 = vpack.c.bf16 %v408, %v408
    %v411 = vsel %vm222, %v173, 0
    %v414 = vsel %vm222, %v409, 0
    %416 = vmatpush.bf16.xpose.msra.mxu0 0
    %417 = vmatpush.bf16.xpose.msra.mxu0 0
    %418 = vmatpush.bf16.xpose.msra.mxu0 0
    %419 = vmatpush.bf16.xpose.msra.mxu0 0
    %420 = vmatpush.bf16.xpose.msra.mxu0 0
    %421 = vmatpush.bf16.xpose.msra.mxu0 0
    %422 = vmatpush.bf16.xpose.msra.mxu0 0
    %423 = vmatpush.bf16.xpose.msra.mxu0 %v414
    %424 = vmatmul.bf16.gmra.mxu0 %v411
    %v425 = vpop.f32.mrf.mxu0
    %v426 = vadd.f32 0.0, %v425
    %v427 = vpop.f32.mrf.mxu0
    %428 = vdwg.mxu0
    %vm429 = vcmp.ne.s32.totalorder %v163, 0
    %v430 = vsel %vm429, %v426, -inf
    %vm431 = vcmask 57344
    %v432 = vsel %vm431, %v430, -inf
    %433 = vmax.xlane.f32.xlu0 %v432
    %v434 = vpop.xlane.xlu0 %433
    %v435 = vsub.f32 %v430, %v434
    %v436 = vmul.f32 %v435, 1.442695
    %v437 = vpow.pop %v436
    %v438 = vsel %vm431, %v437, 0.0
    %439 = vadd.xlane.f32.xlu0 %v438
    %v440 = vpop.xlane.xlu0 %439
    %v441 = vrcp.pop %v440
    %v442 = vmul.f32 %v440, %v441
    %v443 = vsub.f32 1.0, %v442
    %v444 = vmul.f32 %v441, %v443
    %v445 = vadd.f32 %v441, %v444
    %vm446 = vweird.f32 %v440
    %vm447 = vweird.f32 %v441
    %vm448 = vmor %vm446, %vm447
    %v449 = vsel %vm448, %v441, %v445
    %v450 = vand.u32 2147483647, %v440
    %vm451 = vcmp.eq.f32.partialorder %v450, 8.507059e+37
    %v452 = vand.u32 %v440, 2147483648
    %v453 = vor.u32 1.1754944e-38, %v452
    %v454 = vsel %vm451, %v453, %v449
    %v455 = vmul.f32 %v437, %v454
    %457 = vrot.lane.b32.xlu0 %v308, 96
    %v458 = vpop.permute.xlu0 %457
    %vm460 = vcmask 64512
    %v462 = vsel %vm460, %v455, 0
    %464 = vmatpush.msra.mxu0 0.0
    %465 = vmatpush.msra.mxu0 0.0
    %466 = vmatpush.msra.mxu0 0.0
    %467 = vmatpush.msra.mxu0 0.0
    %468 = vmatpush.msra.mxu0 0.0
    %469 = vmatpush.msra.mxu0 0.0
    %470 = vmatpush.msra.mxu0 0.0
    %471 = vmatpush.msra.mxu0 0.0
    %472 = vmatpush.msra.mxu0 0.0
    %473 = vmatpush.msra.mxu0 0.0
    %474 = vmatpush.msra.mxu0 0.0
    %475 = vmatpush.msra.mxu0 0.0
    %476 = vmatpush.msra.mxu0 0.0
    %477 = vmatpush.msra.mxu0 0.0
    %478 = vmatpush.msra.mxu0 0.0
    %479 = vmatpush.msra.mxu0 %v458
    %480 = vmatmul.f32.gmra.mxu0 %v462
    %v481 = vpop.f32.mrf.mxu0
    %v482 = vadd.f32 0.0, %v481
    %483 = vdwg.mxu0
    %v484 = vpack.c.bf16 %v370, %v370
    %v485 = vpack.c.bf16 %v482, %v482
    %v490 = vunpack.c.l.b16 %v178
    %v491 = vunpack.c.l.b16 %v179
    %v492 = vunpack.c.l.b16 %v180
    %v493 = vunpack.c.l.b16 %v181
    %v494 = vpack.c.b16 %v491, %v490
    %v495 = vpack.c.b16 %v493, %v492
    %v499 = vsel %vm222, %v485, 0
    %501 = vmatpush.bf16.msra.mxu0 0
    %502 = vmatpush.bf16.msra.mxu0 0
    %503 = vmatpush.bf16.msra.mxu0 0
    %504 = vmatpush.bf16.msra.mxu0 0
    %505 = vmatpush.bf16.msra.mxu0 0
    %506 = vmatpush.bf16.msra.mxu0 0
    %507 = vmatpush.bf16.msra.mxu0 %v495
    %508 = vmatpush.bf16.msra.mxu0 %v494
    %509 = vmatmul.bf16.gmra.mxu0 %v499
    %v510 = vpop.f32.mrf.mxu0
    %v511 = vadd.f32 0.0, %v510
    %v512 = vpop.f32.mrf.mxu0
    %513 = vdwg.mxu0
    %v518 = vunpack.c.l.b16 %v174
    %v519 = vunpack.c.l.b16 %v175
    %v520 = vunpack.c.l.b16 %v176
    %v521 = vunpack.c.l.b16 %v177
    %v522 = vpack.c.b16 %v519, %v518
    %v523 = vpack.c.b16 %v521, %v520
    %v527 = vsel %vm222, %v484, 0
    %529 = vmatpush.bf16.msra.mxu0 0
    %530 = vmatpush.bf16.msra.mxu0 0
    %531 = vmatpush.bf16.msra.mxu0 0
    %532 = vmatpush.bf16.msra.mxu0 0
    %533 = vmatpush.bf16.msra.mxu0 0
    %534 = vmatpush.bf16.msra.mxu0 0
    %535 = vmatpush.bf16.msra.mxu0 %v523
    %536 = vmatpush.bf16.msra.mxu0 %v522
    %537 = vmatmul.bf16.gmra.mxu0 %v527
    %v538 = vpop.f32.mrf.mxu0
    %v539 = vadd.f32 %v511, %v538
    %v540 = vpop.f32.mrf.mxu0
    %541 = vdwg.mxu0
    %v542 = vadd.f32 %v539, %v182
    %v543 = vmax.f32 %v542, 0.0
    %v544 = vpack.c.bf16 %v543, %v543
    %v549 = vunpack.c.l.b16 %v183
    %v550 = vunpack.c.l.b16 %v184
    %v551 = vunpack.c.l.b16 %v185
    %v552 = vunpack.c.l.b16 %v186
    %v553 = vpack.c.b16 %v550, %v549
    %v554 = vpack.c.b16 %v552, %v551
    %v558 = vsel %vm222, %v544, 0
    %560 = vmatpush.bf16.msra.mxu0 0
    %561 = vmatpush.bf16.msra.mxu0 0
    %562 = vmatpush.bf16.msra.mxu0 0
    %563 = vmatpush.bf16.msra.mxu0 0
    %564 = vmatpush.bf16.msra.mxu0 0
    %565 = vmatpush.bf16.msra.mxu0 0
    %566 = vmatpush.bf16.msra.mxu0 %v554
    %567 = vmatpush.bf16.msra.mxu0 %v553
    %568 = vmatmul.bf16.gmra.mxu0 %v558
    %v569 = vpop.f32.mrf.mxu0
    %v570 = vadd.f32 %v191, %v569
    %v571 = vpop.f32.mrf.mxu0
    %572 = vdwg.mxu0
    %v577 = vunpack.c.l.b16 %v187
    %v578 = vunpack.c.l.b16 %v188
    %v579 = vunpack.c.l.b16 %v189
    %v580 = vunpack.c.l.b16 %v190
    %v581 = vpack.c.b16 %v578, %v577
    %v582 = vpack.c.b16 %v580, %v579
    %585 = vmatpush.bf16.msra.mxu0 0
    %586 = vmatpush.bf16.msra.mxu0 0
    %587 = vmatpush.bf16.msra.mxu0 0
    %588 = vmatpush.bf16.msra.mxu0 0
    %589 = vmatpush.bf16.msra.mxu0 0
    %590 = vmatpush.bf16.msra.mxu0 0
    %591 = vmatpush.bf16.msra.mxu0 %v582
    %592 = vmatpush.bf16.msra.mxu0 %v581
    %593 = vmatmul.bf16.gmra.mxu0 %v391
    %v594 = vpop.f32.mrf.mxu0
    %v595 = vadd.f32 %v192, %v594
    %v596 = vpop.f32.mrf.mxu0
    %597 = vdwg.mxu0
    %v598 = vadd.f32 %v570, %v595
    %v599 = vxor.u32 %v598, 2147483648
    %v600 = vmul.f32 %v599, 1.442695
    %v601 = vpow.pop %v600
    %v602 = vadd.f32 %v601, 1.0
    %v603 = vrcp.pop %v602
    %v604 = vmul.f32 %v602, %v603
    %v605 = vsub.f32 1.0, %v604
    %v606 = vmul.f32 %v603, %v605
    %v607 = vadd.f32 %v603, %v606
    %vm608 = vweird.f32 %v602
    %vm609 = vweird.f32 %v603
    %vm610 = vmor %vm608, %vm609
    %v611 = vsel %vm610, %v603, %v607
    %v612 = vand.u32 2147483647, %v602
    %vm613 = vcmp.eq.f32.partialorder %v612, 8.507059e+37
    %v614 = vand.u32 %v602, 2147483648
    %v615 = vor.u32 1.1754944e-38, %v614
    %v616 = vsel %vm613, %v615, %v611
    %v617 = vmul.f32 1.0, %v616
    %619 = vrot.lane.b32.xlu0 %v595, 64
    %v620 = vpop.permute.xlu0 %619
    %v622 = vmul.f32 %v617, %v620
    %624 = vrot.lane.b32.xlu0 %v622, 64
    %v625 = vpop.permute.xlu0 %624
    %v627 = vadd.f32 %v570, %v625
    %v628 = vtanh.pop %v627
    %v629 = vsub.f32 1.0, %v617
    %631 = vrot.lane.b32.xlu0 %v628, 96
    %v632 = vpop.permute.xlu0 %631
    %v634 = vmul.f32 %v629, %v632
    %v635 = vrot.slane %v308, 7
    %v637 = vmul.f32 %v617, %v635
    %v638 = vadd.f32 %v634, %v637
    %vm639 = vcmask 516352
    %v640 = vsel %vm639, %v638, -inf
    %641 = vmax.xlane.f32.xlu0 %v640
    %v642 = vpop.xlane.xlu0 %641
    %vm643 = vcmp.eq.f32.partialorder %v638, %v642
    %644 = vrot.lane.b32.xlu0 %v194, 32
    %v645 = vpop.permute.xlu0 %644
    %v646 = vsel %vm643, %v645, 32
    %v647 = vsel %vm639, %v646, 2147483647
    %v648 = vand.u32 %v647, 65535
    %v649 = vshra.s32 %v647, 16
    %v650 = vcvt.s32.f32 %v648
    %v651 = vcvt.s32.f32 %v649
    %652 = vmin.xlane.f32.xlu0 %v651
    %v653 = vpop.xlane.xlu0 %652
    %vm654 = vcmp.eq.f32.partialorder %v651, %v653
    %v655 = vsel %vm654, %v650, inf
    %656 = vmin.xlane.f32.xlu0 %v655
    %v657 = vpop.xlane.xlu0 %656
    %v658 = vcvt.f32.s32 %v657
    %v659 = vcvt.f32.s32 %v653
    %v660 = vshll.u32 %v659, 16
    %v661 = vadd.s32 %v660, %v658
    %vm662 = vcmask 0
    %663 = vst.msk [vmem:[%s17] sm:$0x1] %vm662, %v661
    %664 = vst.msk [vmem:[#allocation14] sm:$0x1] %vm431, %v455
    %vm665 = vcmp.eq.s32.totalorder %v194, %v661
    %v666 = vsel %vm665, 1, 0
    %v667 = vcvt.s32.f32 %v666
    %v669 = vsel %vm348, %v667, 0
    %671 = vmatpush.msra.mxu0 0.0
    %672 = vmatpush.msra.mxu0 0.0
    %673 = vmatpush.msra.mxu0 0.0
    %674 = vmatpush.msra.mxu0 0.0
    %675 = vmatpush.msra.mxu0 0.0
    %676 = vmatpush.msra.mxu0 0.0
    %677 = vmatpush.msra.mxu0 0.0
    %678 = vmatpush.msra.mxu0 0.0
    %679 = vmatpush.msra.mxu0 0.0
    %680 = vmatpush.msra.mxu0 0.0
    %681 = vmatpush.msra.mxu0 0.0
    %682 = vmatpush.msra.mxu0 %v168
    %683 = vmatpush.msra.mxu0 %v167
    %684 = vmatpush.msra.mxu0 %v166
    %685 = vmatpush.msra.mxu0 %v165
    %686 = vmatpush.msra.mxu0 %v164
    %687 = vmatmul.f32.gmra.mxu0 %v669
    %v688 = vpop.f32.mrf.mxu0
    %v689 = vadd.f32 0.0, %v688
    %690 = vdwg.mxu0
    %v691 = vpack.c.bf16 %v638, %v638
    %693 = vrot.lane.b32.xlu0 %v691, 96
    %v694 = vpop.permute.xlu0 %693
    %v696 = vsel %vm222, %v694, 0
    %698 = vmatpush.bf16.msra.mxu0 0
    %699 = vmatpush.bf16.msra.mxu0 0
    %700 = vmatpush.bf16.msra.mxu0 0
    %701 = vmatpush.bf16.msra.mxu0 0
    %702 = vmatpush.bf16.msra.mxu0 0
    %703 = vmatpush.bf16.msra.mxu0 0
    %704 = vmatpush.bf16.msra.mxu0 %v387
    %705 = vmatpush.bf16.msra.mxu0 %v386
    %706 = vmatmul.bf16.gmra.mxu0 %v696
    %v707 = vpop.f32.mrf.mxu0
    %v708 = vadd.f32 0.0, %v707
    %v709 = vpop.f32.mrf.mxu0
    %710 = vdwg.mxu0
    %v711 = vperm.slane %v708, 0
    %v712 = vadd.f32 %v711, %v342
    %v713 = vtanh.pop %v712
    %v714 = vpack.c.bf16 %v713, %v713
    %v716 = vsel %vm222, %v714, 0
    %718 = vmatpush.bf16.xpose.msra.mxu0 0
    %719 = vmatpush.bf16.xpose.msra.mxu0 0
    %720 = vmatpush.bf16.xpose.msra.mxu0 0
    %721 = vmatpush.bf16.xpose.msra.mxu0 0
    %722 = vmatpush.bf16.xpose.msra.mxu0 0
    %723 = vmatpush.bf16.xpose.msra.mxu0 0
    %724 = vmatpush.bf16.xpose.msra.mxu0 0
    %725 = vmatpush.bf16.xpose.msra.mxu0 %v716
    %726 = vmatmul.bf16.gmra.mxu0 %v411
    %v727 = vpop.f32.mrf.mxu0
    %v728 = vadd.f32 0.0, %v727
    %v729 = vpop.f32.mrf.mxu0
    %730 = vdwg.mxu0
    %v731 = vsel %vm429, %v728, -inf
    %v732 = vsel %vm431, %v731, -inf
    %733 = vmax.xlane.f32.xlu0 %v732
    %v734 = vpop.xlane.xlu0 %733
    %v735 = vsub.f32 %v731, %v734
    %v736 = vmul.f32 %v735, 1.442695
    %v737 = vpow.pop %v736
    %v738 = vsel %vm431, %v737, 0.0
    %739 = vadd.xlane.f32.xlu0 %v738
    %v740 = vpop.xlane.xlu0 %739
    %v741 = vrcp.pop %v740
    %v742 = vmul.f32 %v740, %v741
    %v743 = vsub.f32 1.0, %v742
    %v744 = vmul.f32 %v741, %v743
    %v745 = vadd.f32 %v741, %v744
    %vm746 = vweird.f32 %v740
    %vm747 = vweird.f32 %v741
    %vm748 = vmor %vm746, %vm747
    %v749 = vsel %vm748, %v741, %v745
    %v750 = vand.u32 2147483647, %v740
    %vm751 = vcmp.eq.f32.partialorder %v750, 8.507059e+37
    %v752 = vand.u32 %v740, 2147483648
    %v753 = vor.u32 1.1754944e-38, %v752
    %v754 = vsel %vm751, %v753, %v749
    %v755 = vmul.f32 %v737, %v754
    %v757 = vsel %vm460, %v755, 0
    %759 = vmatpush.msra.mxu0 0.0
    %760 = vmatpush.msra.mxu0 0.0
    %761 = vmatpush.msra.mxu0 0.0
    %762 = vmatpush.msra.mxu0 0.0
    %763 = vmatpush.msra.mxu0 0.0
    %764 = vmatpush.msra.mxu0 0.0
    %765 = vmatpush.msra.mxu0 0.0
    %766 = vmatpush.msra.mxu0 0.0
    %767 = vmatpush.msra.mxu0 0.0
    %768 = vmatpush.msra.mxu0 0.0
    %769 = vmatpush.msra.mxu0 0.0
    %770 = vmatpush.msra.mxu0 0.0
    %771 = vmatpush.msra.mxu0 0.0
    %772 = vmatpush.msra.mxu0 0.0
    %773 = vmatpush.msra.mxu0 0.0
    %774 = vmatpush.msra.mxu0 %v458
    %775 = vmatmul.f32.gmra.mxu0 %v757
    %v776 = vpop.f32.mrf.mxu0
    %v777 = vadd.f32 0.0, %v776
    %778 = vdwg.mxu0
    %v779 = vpack.c.bf16 %v689, %v689
    %v780 = vpack.c.bf16 %v777, %v777
    %v782 = vsel %vm222, %v780, 0
    %784 = vmatpush.bf16.msra.mxu0 0
    %785 = vmatpush.bf16.msra.mxu0 0
    %786 = vmatpush.bf16.msra.mxu0 0
    %787 = vmatpush.bf16.msra.mxu0 0
    %788 = vmatpush.bf16.msra.mxu0 0
    %789 = vmatpush.bf16.msra.mxu0 0
    %790 = vmatpush.bf16.msra.mxu0 %v495
    %791 = vmatpush.bf16.msra.mxu0 %v494
    %792 = vmatmul.bf16.gmra.mxu0 %v782
    %v793 = vpop.f32.mrf.mxu0
    %v794 = vadd.f32 0.0, %v793
    %v795 = vpop.f32.mrf.mxu0
    %796 = vdwg.mxu0
    %v798 = vsel %vm222, %v779, 0
    %800 = vmatpush.bf16.msra.mxu0 0
    %801 = vmatpush.bf16.msra.mxu0 0
    %802 = vmatpush.bf16.msra.mxu0 0
    %803 = vmatpush.bf16.msra.mxu0 0
    %804 = vmatpush.bf16.msra.mxu0 0
    %805 = vmatpush.bf16.msra.mxu0 0
    %806 = vmatpush.bf16.msra.mxu0 %v523
    %807 = vmatpush.bf16.msra.mxu0 %v522
    %808 = vmatmul.bf16.gmra.mxu0 %v798
    %v809 = vpop.f32.mrf.mxu0
    %v810 = vadd.f32 %v794, %v809
    %v811 = vpop.f32.mrf.mxu0
    %812 = vdwg.mxu0
    %v813 = vadd.f32 %v810, %v182
    %v814 = vmax.f32 %v813, 0.0
    %v815 = vpack.c.bf16 %v814, %v814
    %v817 = vsel %vm222, %v815, 0
    %819 = vmatpush.bf16.msra.mxu0 0
    %820 = vmatpush.bf16.msra.mxu0 0
    %821 = vmatpush.bf16.msra.mxu0 0
    %822 = vmatpush.bf16.msra.mxu0 0
    %823 = vmatpush.bf16.msra.mxu0 0
    %824 = vmatpush.bf16.msra.mxu0 0
    %825 = vmatpush.bf16.msra.mxu0 %v554
    %826 = vmatpush.bf16.msra.mxu0 %v553
    %827 = vmatmul.bf16.gmra.mxu0 %v817
    %v828 = vpop.f32.mrf.mxu0
    %v829 = vadd.f32 %v191, %v828
    %v830 = vpop.f32.mrf.mxu0
    %831 = vdwg.mxu0
    %832 = vmatpush.bf16.msra.mxu0 0
    %833 = vmatpush.bf16.msra.mxu0 0
    %834 = vmatpush.bf16.msra.mxu0 0
    %835 = vmatpush.bf16.msra.mxu0 0
    %836 = vmatpush.bf16.msra.mxu0 0
    %837 = vmatpush.bf16.msra.mxu0 0
    %838 = vmatpush.bf16.msra.mxu0 %v582
    %839 = vmatpush.bf16.msra.mxu0 %v581
    %840 = vmatmul.bf16.gmra.mxu0 %v696
    %v841 = vpop.f32.mrf.mxu0
    %v842 = vadd.f32 %v192, %v841
    %v843 = vpop.f32.mrf.mxu0
    %844 = vdwg.mxu0
    %v845 = vadd.f32 %v829, %v842
    %v846 = vxor.u32 %v845, 2147483648
    %v847 = vmul.f32 %v846, 1.442695
    %v848 = vpow.pop %v847
    %v849 = vadd.f32 %v848, 1.0
    %v850 = vrcp.pop %v849
    %v851 = vmul.f32 %v849, %v850
    %v852 = vsub.f32 1.0, %v851
    %v853 = vmul.f32 %v850, %v852
    %v854 = vadd.f32 %v850, %v853
    %vm855 = vweird.f32 %v849
    %vm856 = vweird.f32 %v850
    %vm857 = vmor %vm855, %vm856
    %v858 = vsel %vm857, %v850, %v854
    %v859 = vand.u32 2147483647, %v849
    %vm860 = vcmp.eq.f32.partialorder %v859, 8.507059e+37
    %v861 = vand.u32 %v849, 2147483648
    %v862 = vor.u32 1.1754944e-38, %v861
    %v863 = vsel %vm860, %v862, %v858
    %v864 = vmul.f32 1.0, %v863
    %866 = vrot.lane.b32.xlu0 %v842, 64
    %v867 = vpop.permute.xlu0 %866
    %v869 = vmul.f32 %v864, %v867
    %871 = vrot.lane.b32.xlu0 %v869, 64
    %v872 = vpop.permute.xlu0 %871
    %v874 = vadd.f32 %v829, %v872
    %v875 = vtanh.pop %v874
    %v876 = vsub.f32 1.0, %v864
    %878 = vrot.lane.b32.xlu0 %v875, 96
    %v879 = vpop.permute.xlu0 %878
    %v881 = vmul.f32 %v876, %v879
    %v882 = vmul.f32 %v864, %v638
    %v883 = vadd.f32 %v881, %v882
    %v884 = vsel %vm639, %v883, -inf
    %885 = vmax.xlane.f32.xlu0 %v884
    %v886 = vpop.xlane.xlu0 %885
    %vm887 = vcmp.eq.f32.partialorder %v883, %v886
    %v888 = vsel %vm887, %v645, 32
    %v889 = vsel %vm639, %v888, 2147483647
    %v890 = vand.u32 %v889, 65535
    %v891 = vshra.s32 %v889, 16
    %v892 = vcvt.s32.f32 %v890
    %v893 = vcvt.s32.f32 %v891
    %894 = vmin.xlane.f32.xlu0 %v893
    %v895 = vpop.xlane.xlu0 %894
    %vm896 = vcmp.eq.f32.partialorder %v893, %v895
    %v897 = vsel %vm896, %v892, inf
    %898 = vmin.xlane.f32.xlu0 %v897
    %v899 = vpop.xlane.xlu0 %898
    %v900 = vcvt.f32.s32 %v899
    %v901 = vcvt.f32.s32 %v895
    %v902 = vshll.u32 %v901, 16
    %v903 = vadd.s32 %v902, %v900
    %904 = vst.msk [vmem:[%s17 + $0x1] sm:$0x1] %vm662, %v903
    %905 = vst.msk [vmem:[#allocation14 + $0x1] sm:$0x1] %vm431, %v755
    %vm906 = vcmp.eq.s32.totalorder %v194, %v903
    %v907 = vsel %vm906, 1, 0
    %v908 = vcvt.s32.f32 %v907
    %v910 = vsel %vm348, %v908, 0
    %912 = vmatpush.msra.mxu0 0.0
    %913 = vmatpush.msra.mxu0 0.0
    %914 = vmatpush.msra.mxu0 0.0
    %915 = vmatpush.msra.mxu0 0.0
    %916 = vmatpush.msra.mxu0 0.0
    %917 = vmatpush.msra.mxu0 0.0
    %918 = vmatpush.msra.mxu0 0.0
    %919 = vmatpush.msra.mxu0 0.0
    %920 = vmatpush.msra.mxu0 0.0
    %921 = vmatpush.msra.mxu0 0.0
    %922 = vmatpush.msra.mxu0 0.0
    %923 = vmatpush.msra.mxu0 %v168
    %924 = vmatpush.msra.mxu0 %v167
    %925 = vmatpush.msra.mxu0 %v166
    %926 = vmatpush.msra.mxu0 %v165
    %927 = vmatpush.msra.mxu0 %v164
    %928 = vmatmul.f32.gmra.mxu0 %v910
    %v929 = vpop.f32.mrf.mxu0
    %v930 = vadd.f32 0.0, %v929
    %931 = vdwg.mxu0
    %v932 = vpack.c.bf16 %v883, %v883
    %934 = vrot.lane.b32.xlu0 %v932, 96
    %v935 = vpop.permute.xlu0 %934
    %v937 = vsel %vm222, %v935, 0
    %939 = vmatpush.bf16.msra.mxu0 0
    %940 = vmatpush.bf16.msra.mxu0 0
    %941 = vmatpush.bf16.msra.mxu0 0
    %942 = vmatpush.bf16.msra.mxu0 0
    %943 = vmatpush.bf16.msra.mxu0 0
    %944 = vmatpush.bf16.msra.mxu0 0
    %945 = vmatpush.bf16.msra.mxu0 %v387
    %946 = vmatpush.bf16.msra.mxu0 %v386
    %947 = vmatmul.bf16.gmra.mxu0 %v937
    %v948 = vpop.f32.mrf.mxu0
    %v949 = vadd.f32 0.0, %v948
    %v950 = vpop.f32.mrf.mxu0
    %951 = vdwg.mxu0
    %v952 = vperm.slane %v949, 0
    %v953 = vadd.f32 %v952, %v342
    %v954 = vtanh.pop %v953
    %v955 = vpack.c.bf16 %v954, %v954
    %v957 = vsel %vm222, %v955, 0
    %959 = vmatpush.bf16.xpose.msra.mxu0 0
    %960 = vmatpush.bf16.xpose.msra.mxu0 0
    %961 = vmatpush.bf16.xpose.msra.mxu0 0
    %962 = vmatpush.bf16.xpose.msra.mxu0 0
    %963 = vmatpush.bf16.xpose.msra.mxu0 0
    %964 = vmatpush.bf16.xpose.msra.mxu0 0
    %965 = vmatpush.bf16.xpose.msra.mxu0 0
    %966 = vmatpush.bf16.xpose.msra.mxu0 %v957
    %967 = vmatmul.bf16.gmra.mxu0 %v411
    %v968 = vpop.f32.mrf.mxu0
    %v969 = vadd.f32 0.0, %v968
    %v970 = vpop.f32.mrf.mxu0
    %971 = vdwg.mxu0
    %v972 = vsel %vm429, %v969, -inf
    %v973 = vsel %vm431, %v972, -inf
    %974 = vmax.xlane.f32.xlu0 %v973
    %v975 = vpop.xlane.xlu0 %974
    %v976 = vsub.f32 %v972, %v975
    %v977 = vmul.f32 %v976, 1.442695
    %v978 = vpow.pop %v977
    %v979 = vsel %vm431, %v978, 0.0
    %980 = vadd.xlane.f32.xlu0 %v979
    %v981 = vpop.xlane.xlu0 %980
    %v982 = vrcp.pop %v981
    %v983 = vmul.f32 %v981, %v982
    %v984 = vsub.f32 1.0, %v983
    %v985 = vmul.f32 %v982, %v984
    %v986 = vadd.f32 %v982, %v985
    %vm987 = vweird.f32 %v981
    %vm988 = vweird.f32 %v982
    %vm989 = vmor %vm987, %vm988
    %v990 = vsel %vm989, %v982, %v986
    %v991 = vand.u32 2147483647, %v981
    %vm992 = vcmp.eq.f32.partialorder %v991, 8.507059e+37
    %v993 = vand.u32 %v981, 2147483648
    %v994 = vor.u32 1.1754944e-38, %v993
    %v995 = vsel %vm992, %v994, %v990
    %v996 = vmul.f32 %v978, %v995
    %v998 = vsel %vm460, %v996, 0
    %1000 = vmatpush.msra.mxu0 0.0
    %1001 = vmatpush.msra.mxu0 0.0
    %1002 = vmatpush.msra.mxu0 0.0
    %1003 = vmatpush.msra.mxu0 0.0
    %1004 = vmatpush.msra.mxu0 0.0
    %1005 = vmatpush.msra.mxu0 0.0
    %1006 = vmatpush.msra.mxu0 0.0
    %1007 = vmatpush.msra.mxu0 0.0
    %1008 = vmatpush.msra.mxu0 0.0
    %1009 = vmatpush.msra.mxu0 0.0
    %1010 = vmatpush.msra.mxu0 0.0
    %1011 = vmatpush.msra.mxu0 0.0
    %1012 = vmatpush.msra.mxu0 0.0
    %1013 = vmatpush.msra.mxu0 0.0
    %1014 = vmatpush.msra.mxu0 0.0
    %1015 = vmatpush.msra.mxu0 %v458
    %1016 = vmatmul.f32.gmra.mxu0 %v998
    %v1017 = vpop.f32.mrf.mxu0
    %v1018 = vadd.f32 0.0, %v1017
    %1019 = vdwg.mxu0
    %v1020 = vpack.c.bf16 %v930, %v930
    %v1021 = vpack.c.bf16 %v1018, %v1018
    %v1023 = vsel %vm222, %v1021, 0
    %1025 = vmatpush.bf16.msra.mxu0 0
    %1026 = vmatpush.bf16.msra.mxu0 0
    %1027 = vmatpush.bf16.msra.mxu0 0
    %1028 = vmatpush.bf16.msra.mxu0 0
    %1029 = vmatpush.bf16.msra.mxu0 0
    %1030 = vmatpush.bf16.msra.mxu0 0
    %1031 = vmatpush.bf16.msra.mxu0 %v495
    %1032 = vmatpush.bf16.msra.mxu0 %v494
    %1033 = vmatmul.bf16.gmra.mxu0 %v1023
    %v1034 = vpop.f32.mrf.mxu0
    %v1035 = vadd.f32 0.0, %v1034
    %v1036 = vpop.f32.mrf.mxu0
    %1037 = vdwg.mxu0
    %v1039 = vsel %vm222, %v1020, 0
    %1041 = vmatpush.bf16.msra.mxu0 0
    %1042 = vmatpush.bf16.msra.mxu0 0
    %1043 = vmatpush.bf16.msra.mxu0 0
    %1044 = vmatpush.bf16.msra.mxu0 0
    %1045 = vmatpush.bf16.msra.mxu0 0
    %1046 = vmatpush.bf16.msra.mxu0 0
    %1047 = vmatpush.bf16.msra.mxu0 %v523
    %1048 = vmatpush.bf16.msra.mxu0 %v522
    %1049 = vmatmul.bf16.gmra.mxu0 %v1039
    %v1050 = vpop.f32.mrf.mxu0
    %v1051 = vadd.f32 %v1035, %v1050
    %v1052 = vpop.f32.mrf.mxu0
    %1053 = vdwg.mxu0
    %v1054 = vadd.f32 %v1051, %v182
    %v1055 = vmax.f32 %v1054, 0.0
    %v1056 = vpack.c.bf16 %v1055, %v1055
    %v1058 = vsel %vm222, %v1056, 0
    %1060 = vmatpush.bf16.msra.mxu0 0
    %1061 = vmatpush.bf16.msra.mxu0 0
    %1062 = vmatpush.bf16.msra.mxu0 0
    %1063 = vmatpush.bf16.msra.mxu0 0
    %1064 = vmatpush.bf16.msra.mxu0 0
    %1065 = vmatpush.bf16.msra.mxu0 0
    %1066 = vmatpush.bf16.msra.mxu0 %v554
    %1067 = vmatpush.bf16.msra.mxu0 %v553
    %1068 = vmatmul.bf16.gmra.mxu0 %v1058
    %v1069 = vpop.f32.mrf.mxu0
    %v1070 = vadd.f32 %v191, %v1069
    %v1071 = vpop.f32.mrf.mxu0
    %1072 = vdwg.mxu0
    %1073 = vmatpush.bf16.msra.mxu0 0
    %1074 = vmatpush.bf16.msra.mxu0 0
    %1075 = vmatpush.bf16.msra.mxu0 0
    %1076 = vmatpush.bf16.msra.mxu0 0
    %1077 = vmatpush.bf16.msra.mxu0 0
    %1078 = vmatpush.bf16.msra.mxu0 0
    %1079 = vmatpush.bf16.msra.mxu0 %v582
    %1080 = vmatpush.bf16.msra.mxu0 %v581
    %1081 = vmatmul.bf16.gmra.mxu0 %v937
    %v1082 = vpop.f32.mrf.mxu0
    %v1083 = vadd.f32 %v192, %v1082
    %v1084 = vpop.f32.mrf.mxu0
    %1085 = vdwg.mxu0
    %v1086 = vadd.f32 %v1070, %v1083
    %v1087 = vxor.u32 %v1086, 2147483648
    %v1088 = vmul.f32 %v1087, 1.442695
    %v1089 = vpow.pop %v1088
    %v1090 = vadd.f32 %v1089, 1.0
    %v1091 = vrcp.pop %v1090
    %v1092 = vmul.f32 %v1090, %v1091
    %v1093 = vsub.f32 1.0, %v1092
    %v1094 = vmul.f32 %v1091, %v1093
    %v1095 = vadd.f32 %v1091, %v1094
    %vm1096 = vweird.f32 %v1090
    %vm1097 = vweird.f32 %v1091
    %vm1098 = vmor %vm1096, %vm1097
    %v1099 = vsel %vm1098, %v1091, %v1095
    %v1100 = vand.u32 2147483647, %v1090
    %vm1101 = vcmp.eq.f32.partialorder %v1100, 8.507059e+37
    %v1102 = vand.u32 %v1090, 2147483648
    %v1103 = vor.u32 1.1754944e-38, %v1102
    %v1104 = vsel %vm1101, %v1103, %v1099
    %v1105 = vmul.f32 1.0, %v1104
    %1107 = vrot.lane.b32.xlu0 %v1083, 64
    %v1108 = vpop.permute.xlu0 %1107
    %v1110 = vmul.f32 %v1105, %v1108
    %1112 = vrot.lane.b32.xlu0 %v1110, 64
    %v1113 = vpop.permute.xlu0 %1112
    %v1115 = vadd.f32 %v1070, %v1113
    %v1116 = vtanh.pop %v1115
    %v1117 = vsub.f32 1.0, %v1105
    %1119 = vrot.lane.b32.xlu0 %v1116, 96
    %v1120 = vpop.permute.xlu0 %1119
    %v1122 = vmul.f32 %v1117, %v1120
    %v1123 = vmul.f32 %v1105, %v883
    %v1124 = vadd.f32 %v1122, %v1123
    %v1125 = vsel %vm639, %v1124, -inf
    %1126 = vmax.xlane.f32.xlu0 %v1125
    %v1127 = vpop.xlane.xlu0 %1126
    %vm1128 = vcmp.eq.f32.partialorder %v1124, %v1127
    %v1129 = vsel %vm1128, %v645, 32
    %v1130 = vsel %vm639, %v1129, 2147483647
    %v1131 = vand.u32 %v1130, 65535
    %v1132 = vshra.s32 %v1130, 16
    %v1133 = vcvt.s32.f32 %v1131
    %v1134 = vcvt.s32.f32 %v1132
    %1135 = vmin.xlane.f32.xlu0 %v1134
    %v1136 = vpop.xlane.xlu0 %1135
    %vm1137 = vcmp.eq.f32.partialorder %v1134, %v1136
    %v1138 = vsel %vm1137, %v1133, inf
    %1139 = vmin.xlane.f32.xlu0 %v1138
    %v1140 = vpop.xlane.xlu0 %1139
    %v1141 = vcvt.f32.s32 %v1140
    %v1142 = vcvt.f32.s32 %v1136
    %v1143 = vshll.u32 %v1142, 16
    %v1144 = vadd.s32 %v1143, %v1141
    %1145 = vst.msk [vmem:[%s17 + $0x2] sm:$0x1] %vm662, %v1144
    %1146 = vst.msk [vmem:[#allocation14 + $0x2] sm:$0x1] %vm431, %v996
    %vm1147 = vcmp.eq.s32.totalorder %v194, %v1144
    %v1148 = vsel %vm1147, 1, 0
    %v1149 = vcvt.s32.f32 %v1148
    %v1151 = vsel %vm348, %v1149, 0
    %1153 = vmatpush.msra.mxu0 0.0
    %1154 = vmatpush.msra.mxu0 0.0
    %1155 = vmatpush.msra.mxu0 0.0
    %1156 = vmatpush.msra.mxu0 0.0
    %1157 = vmatpush.msra.mxu0 0.0
    %1158 = vmatpush.msra.mxu0 0.0
    %1159 = vmatpush.msra.mxu0 0.0
    %1160 = vmatpush.msra.mxu0 0.0
    %1161 = vmatpush.msra.mxu0 0.0
    %1162 = vmatpush.msra.mxu0 0.0
    %1163 = vmatpush.msra.mxu0 0.0
    %1164 = vmatpush.msra.mxu0 %v168
    %1165 = vmatpush.msra.mxu0 %v167
    %1166 = vmatpush.msra.mxu0 %v166
    %1167 = vmatpush.msra.mxu0 %v165
    %1168 = vmatpush.msra.mxu0 %v164
    %1169 = vmatmul.f32.gmra.mxu0 %v1151
    %v1170 = vpop.f32.mrf.mxu0
    %v1171 = vadd.f32 0.0, %v1170
    %1172 = vdwg.mxu0
    %v1173 = vpack.c.bf16 %v1124, %v1124
    %1175 = vrot.lane.b32.xlu0 %v1173, 96
    %v1176 = vpop.permute.xlu0 %1175
    %v1178 = vsel %vm222, %v1176, 0
    %1180 = vmatpush.bf16.msra.mxu0 0
    %1181 = vmatpush.bf16.msra.mxu0 0
    %1182 = vmatpush.bf16.msra.mxu0 0
    %1183 = vmatpush.bf16.msra.mxu0 0
    %1184 = vmatpush.bf16.msra.mxu0 0
    %1185 = vmatpush.bf16.msra.mxu0 0
    %1186 = vmatpush.bf16.msra.mxu0 %v387
    %1187 = vmatpush.bf16.msra.mxu0 %v386
    %1188 = vmatmul.bf16.gmra.mxu0 %v1178
    %v1189 = vpop.f32.mrf.mxu0
    %v1190 = vadd.f32 0.0, %v1189
    %v1191 = vpop.f32.mrf.mxu0
    %1192 = vdwg.mxu0
    %v1193 = vperm.slane %v1190, 0
    %v1194 = vadd.f32 %v1193, %v342
    %v1195 = vtanh.pop %v1194
    %v1196 = vpack.c.bf16 %v1195, %v1195
    %v1198 = vsel %vm222, %v1196, 0
    %1200 = vmatpush.bf16.xpose.msra.mxu0 0
    %1201 = vmatpush.bf16.xpose.msra.mxu0 0
    %1202 = vmatpush.bf16.xpose.msra.mxu0 0
    %1203 = vmatpush.bf16.xpose.msra.mxu0 0
    %1204 = vmatpush.bf16.xpose.msra.mxu0 0
    %1205 = vmatpush.bf16.xpose.msra.mxu0 0
    %1206 = vmatpush.bf16.xpose.msra.mxu0 0
    %1207 = vmatpush.bf16.xpose.msra.mxu0 %v1198
    %1208 = vmatmul.bf16.gmra.mxu0 %v411
    %v1209 = vpop.f32.mrf.mxu0
    %v1210 = vadd.f32 0.0, %v1209
    %v1211 = vpop.f32.mrf.mxu0
    %1212 = vdwg.mxu0
    %v1213 = vsel %vm429, %v1210, -inf
    %v1214 = vsel %vm431, %v1213, -inf
    %1215 = vmax.xlane.f32.xlu0 %v1214
    %v1216 = vpop.xlane.xlu0 %1215
    %v1217 = vsub.f32 %v1213, %v1216
    %v1218 = vmul.f32 %v1217, 1.442695
    %v1219 = vpow.pop %v1218
    %v1220 = vsel %vm431, %v1219, 0.0
    %1221 = vadd.xlane.f32.xlu0 %v1220
    %v1222 = vpop.xlane.xlu0 %1221
    %v1223 = vrcp.pop %v1222
    %v1224 = vmul.f32 %v1222, %v1223
    %v1225 = vsub.f32 1.0, %v1224
    %v1226 = vmul.f32 %v1223, %v1225
    %v1227 = vadd.f32 %v1223, %v1226
    %vm1228 = vweird.f32 %v1222
    %vm1229 = vweird.f32 %v1223
    %vm1230 = vmor %vm1228, %vm1229
    %v1231 = vsel %vm1230, %v1223, %v1227
    %v1232 = vand.u32 2147483647, %v1222
    %vm1233 = vcmp.eq.f32.partialorder %v1232, 8.507059e+37
    %v1234 = vand.u32 %v1222, 2147483648
    %v1235 = vor.u32 1.1754944e-38, %v1234
    %v1236 = vsel %vm1233, %v1235, %v1231
    %v1237 = vmul.f32 %v1219, %v1236
    %v1239 = vsel %vm460, %v1237, 0
    %1241 = vmatpush.msra.mxu0 0.0
    %1242 = vmatpush.msra.mxu0 0.0
    %1243 = vmatpush.msra.mxu0 0.0
    %1244 = vmatpush.msra.mxu0 0.0
    %1245 = vmatpush.msra.mxu0 0.0
    %1246 = vmatpush.msra.mxu0 0.0
    %1247 = vmatpush.msra.mxu0 0.0
    %1248 = vmatpush.msra.mxu0 0.0
    %1249 = vmatpush.msra.mxu0 0.0
    %1250 = vmatpush.msra.mxu0 0.0
    %1251 = vmatpush.msra.mxu0 0.0
    %1252 = vmatpush.msra.mxu0 0.0
    %1253 = vmatpush.msra.mxu0 0.0
    %1254 = vmatpush.msra.mxu0 0.0
    %1255 = vmatpush.msra.mxu0 0.0
    %1256 = vmatpush.msra.mxu0 %v458
    %1257 = vmatmul.f32.gmra.mxu0 %v1239
    %v1258 = vpop.f32.mrf.mxu0
    %v1259 = vadd.f32 0.0, %v1258
    %1260 = vdwg.mxu0
    %v1261 = vpack.c.bf16 %v1171, %v1171
    %v1262 = vpack.c.bf16 %v1259, %v1259
    %v1264 = vsel %vm222, %v1262, 0
    %1266 = vmatpush.bf16.msra.mxu0 0
    %1267 = vmatpush.bf16.msra.mxu0 0
    %1268 = vmatpush.bf16.msra.mxu0 0
    %1269 = vmatpush.bf16.msra.mxu0 0
    %1270 = vmatpush.bf16.msra.mxu0 0
    %1271 = vmatpush.bf16.msra.mxu0 0
    %1272 = vmatpush.bf16.msra.mxu0 %v495
    %1273 = vmatpush.bf16.msra.mxu0 %v494
    %1274 = vmatmul.bf16.gmra.mxu0 %v1264
    %v1275 = vpop.f32.mrf.mxu0
    %v1276 = vadd.f32 0.0, %v1275
    %v1277 = vpop.f32.mrf.mxu0
    %1278 = vdwg.mxu0
    %v1280 = vsel %vm222, %v1261, 0
    %1282 = vmatpush.bf16.msra.mxu0 0
    %1283 = vmatpush.bf16.msra.mxu0 0
    %1284 = vmatpush.bf16.msra.mxu0 0
    %1285 = vmatpush.bf16.msra.mxu0 0
    %1286 = vmatpush.bf16.msra.mxu0 0
    %1287 = vmatpush.bf16.msra.mxu0 0
    %1288 = vmatpush.bf16.msra.mxu0 %v523
    %1289 = vmatpush.bf16.msra.mxu0 %v522
    %1290 = vmatmul.bf16.gmra.mxu0 %v1280
    %v1291 = vpop.f32.mrf.mxu0
    %v1292 = vadd.f32 %v1276, %v1291
    %v1293 = vpop.f32.mrf.mxu0
    %1294 = vdwg.mxu0
    %v1295 = vadd.f32 %v1292, %v182
    %v1296 = vmax.f32 %v1295, 0.0
    %v1297 = vpack.c.bf16 %v1296, %v1296
    %v1299 = vsel %vm222, %v1297, 0
    %1301 = vmatpush.bf16.msra.mxu0 0
    %1302 = vmatpush.bf16.msra.mxu0 0
    %1303 = vmatpush.bf16.msra.mxu0 0
    %1304 = vmatpush.bf16.msra.mxu0 0
    %1305 = vmatpush.bf16.msra.mxu0 0
    %1306 = vmatpush.bf16.msra.mxu0 0
    %1307 = vmatpush.bf16.msra.mxu0 %v554
    %1308 = vmatpush.bf16.msra.mxu0 %v553
    %1309 = vmatmul.bf16.gmra.mxu0 %v1299
    %v1310 = vpop.f32.mrf.mxu0
    %v1311 = vadd.f32 %v191, %v1310
    %v1312 = vpop.f32.mrf.mxu0
    %1313 = vdwg.mxu0
    %1314 = vmatpush.bf16.msra.mxu0 0
    %1315 = vmatpush.bf16.msra.mxu0 0
    %1316 = vmatpush.bf16.msra.mxu0 0
    %1317 = vmatpush.bf16.msra.mxu0 0
    %1318 = vmatpush.bf16.msra.mxu0 0
    %1319 = vmatpush.bf16.msra.mxu0 0
    %1320 = vmatpush.bf16.msra.mxu0 %v582
    %1321 = vmatpush.bf16.msra.mxu0 %v581
    %1322 = vmatmul.bf16.gmra.mxu0 %v1178
    %v1323 = vpop.f32.mrf.mxu0
    %v1324 = vadd.f32 %v192, %v1323
    %v1325 = vpop.f32.mrf.mxu0
    %1326 = vdwg.mxu0
    %v1327 = vadd.f32 %v1311, %v1324
    %v1328 = vxor.u32 %v1327, 2147483648
    %v1329 = vmul.f32 %v1328, 1.442695
    %v1330 = vpow.pop %v1329
    %v1331 = vadd.f32 %v1330, 1.0
    %v1332 = vrcp.pop %v1331
    %v1333 = vmul.f32 %v1331, %v1332
    %v1334 = vsub.f32 1.0, %v1333
    %v1335 = vmul.f32 %v1332, %v1334
    %v1336 = vadd.f32 %v1332, %v1335
    %vm1337 = vweird.f32 %v1331
    %vm1338 = vweird.f32 %v1332
    %vm1339 = vmor %vm1337, %vm1338
    %v1340 = vsel %vm1339, %v1332, %v1336
    %v1341 = vand.u32 2147483647, %v1331
    %vm1342 = vcmp.eq.f32.partialorder %v1341, 8.507059e+37
    %v1343 = vand.u32 %v1331, 2147483648
    %v1344 = vor.u32 1.1754944e-38, %v1343
    %v1345 = vsel %vm1342, %v1344, %v1340
    %v1346 = vmul.f32 1.0, %v1345
    %1348 = vrot.lane.b32.xlu0 %v1324, 64
    %v1349 = vpop.permute.xlu0 %1348
    %v1351 = vmul.f32 %v1346, %v1349
    %1353 = vrot.lane.b32.xlu0 %v1351, 64
    %v1354 = vpop.permute.xlu0 %1353
    %v1356 = vadd.f32 %v1311, %v1354
    %v1357 = vtanh.pop %v1356
    %v1358 = vsub.f32 1.0, %v1346
    %1360 = vrot.lane.b32.xlu0 %v1357, 96
    %v1361 = vpop.permute.xlu0 %1360
    %v1363 = vmul.f32 %v1358, %v1361
    %v1364 = vmul.f32 %v1346, %v1124
    %v1365 = vadd.f32 %v1363, %v1364
    %v1366 = vsel %vm639, %v1365, -inf
    %1367 = vmax.xlane.f32.xlu0 %v1366
    %v1368 = vpop.xlane.xlu0 %1367
    %vm1369 = vcmp.eq.f32.partialorder %v1365, %v1368
    %v1370 = vsel %vm1369, %v645, 32
    %v1371 = vsel %vm639, %v1370, 2147483647
    %v1372 = vand.u32 %v1371, 65535
    %v1373 = vshra.s32 %v1371, 16
    %v1374 = vcvt.s32.f32 %v1372
    %v1375 = vcvt.s32.f32 %v1373
    %1376 = vmin.xlane.f32.xlu0 %v1375
    %v1377 = vpop.xlane.xlu0 %1376
    %vm1378 = vcmp.eq.f32.partialorder %v1375, %v1377
    %v1379 = vsel %vm1378, %v1374, inf
    %1380 = vmin.xlane.f32.xlu0 %v1379
    %v1381 = vpop.xlane.xlu0 %1380
    %v1382 = vcvt.f32.s32 %v1381
    %v1383 = vcvt.f32.s32 %v1377
    %v1384 = vshll.u32 %v1383, 16
    %v1385 = vadd.s32 %v1384, %v1382
    %1386 = vst.msk [vmem:[%s17 + $0x3] sm:$0x1] %vm662, %v1385
    %1387 = vst.msk [vmem:[#allocation14 + $0x3] sm:$0x1] %vm431, %v1237
    // Predicated region
    $region98: #{run_seq2seq.1} parent=1 // pred_check
      _
    $region99: #{run_seq2seq.1} parent=1 // pred_check_branch
      %1389 = sbr.rel (0) target = $region101
    $region100: #{run_seq2seq.1} parent=1 // pred_region
      _
    $region101: #{run_seq2seq.1} parent=1 // pred_fallthru
      _
    // Predicated region
    $region102: #{run_seq2seq.1} parent=1 // pred_check
      _
    $region103: #{run_seq2seq.1} parent=1 // pred_check_branch
      %1391 = sbr.rel (0) target = $region105
    $region104: #{run_seq2seq.1} parent=1 // pred_region
      %1393 = vsyncadd [#allocation4], 0
      %s1395 = sshll.u32 [#allocation14], 4
      %s1396 = int_to_ptr.vmem [resolvable:$true] %s1395
      %s1397 = sshll.u32 %s18, 4
      %s1398 = int_to_ptr.hbm [resolvable:$true] %s1397
      %1400 = dma.vmem_to_hbm [thread:$0]  %s1396, 64, %s1398, [#allocation4]
    $region105: #{run_seq2seq.1} parent=1 // pred_fallthru
      _
    // Predicated region
    $region106: #{run_seq2seq.1} parent=1 // pred_check
      _
    $region107: #{run_seq2seq.1} parent=1 // pred_check_branch
      %1402 = sbr.rel (0) target = $region109
    $region108: #{run_seq2seq.1} parent=1 // pred_region
      _
    $region109: #{run_seq2seq.1} parent=1 // pred_fallthru
      _
    // Predicated region
    $region110: #{run_seq2seq.1} parent=1 // pred_check
      _
    $region111: #{run_seq2seq.1} parent=1 // pred_check_branch
      %1404 = sbr.rel (0) target = $region113
    $region112: #{run_seq2seq.1} parent=1 // pred_region
      %1406 = dma.done [#allocation4], 64
    $region113: #{run_seq2seq.1} parent=1 // pred_fallthru
      _
    %1407 = vsyncpa [#allocation3], 1
    %1408 = vsyncpa [#allocation6], 1
    %1409 = vsyncpa [#allocation9], 1
    %1410 = vsyncpa [#allocation12], 1
    %1411 = vsyncpa [#allocation4], 1

</llo_original>
